<compile_context>
chip_gen: v7x
topology: tpu7x:2x2x1
jax: 0.10.0
libtpu: 0.0.40
codegen_flags: <defaults>
</compile_context>

<pallas_src>
import functools

import jax
import jax.numpy as jnp
from jax.experimental import pallas as pl
from jax.experimental.pallas import tpu as pltpu


def _round_up(x, m):
    return ((x + m - 1) // m) * m


def _tpu_generation():
    """Best-effort TPU generation from device_kind (0 if unknown / not a TPU)."""
    try:
        kind = jax.devices()[0].device_kind.lower()
    except Exception:
        return 0
    for gen in (7, 6, 5, 4, 3, 2):
        if f"v{gen}" in kind or f"tpu{gen}" in kind:
            return gen
    return 0


def _default_elementwise_bf16():
    # v6e / v7x have a bf16 VPU -> run the bias-add/ReLU chain in bf16 there.
    # v5e (no bf16 VPU/EUP) and unknown backends stay f32.
    return _tpu_generation() >= 6


def _num_tensorcores():
    # v7x is the only target here with 2 TensorCores per chip.
    return 2 if _tpu_generation() >= 7 else 1


def _choose_tile_b(batch, *, num_cores=1, granule=16, max_tile=256):
    """Batch tile:
       - small batch: ONE grid step, tile_b = round_up(B, granule)
       - v7x (2 TCs): at least num_cores blocks when the batch allows it
       - large batch: up to 256-row tiles (amortizes RHS pushes on the 256-wide MXU)."""
    batch = max(int(batch), 1)
    n_blocks = max(1, pl.cdiv(batch, max_tile))
    if num_cores > 1 and batch >= num_cores * granule:
        n_blocks = max(n_blocks, num_cores)
    tile = _round_up(pl.cdiv(batch, n_blocks), granule)
    return int(min(tile, max_tile))


def vae_kernel(x_ref, eps_ref,
               w1, b1, w2, b2, w3, b3, whv, bhv,
               wd1, bd1, wd2, bd2, wd3, bd3,
               xmean_ref, zlat_ref, *, zw):
    f32 = jnp.float32

    def mm(a, w_ref):
        w = w_ref[...]
        # Cast activations to the (bf16) weight dtype at the MXU input, accumulate f32.
        return jnp.dot(a.astype(w.dtype), w, preferred_element_type=f32)

    def layer(a, w_ref, b_ref, relu=True):
        # Bias dtype == activation compute dtype (bf16 on v6e/v7x, f32 on v5e).
        b = b_ref[...]
        y = mm(a, w_ref).astype(b.dtype) + b
        return jnp.maximum(y, 0) if relu else y

    x = x_ref[...]

    # ---- shared encoder: Linear -> ReLU -> Linear -> ReLU -> Linear ----
    h = layer(x, w1, b1)
    h = layer(h, w2, b2)
    h = layer(h, w3, b3, relu=False)

    # ---- fused, pre-packed heads (single matmul, f32 bias add) ----
    #   hv[:, :zw]  = [ z_mean | z_log_var | z_mean    | 0 ]   (slots of width out_size)
    #   hv[:, zw:]  = [   0    |     0     | z_log_var | 0 ]
    hv = mm(h, whv) + bhv[...]

    # ---- reparameterization (training=True path of rsample), packed in one shot ----
    # eps_ref has eps only in lanes [2*out_size, 3*out_size); padded lanes stay exactly 0
    # because exp(0) * 0 = 0, so  u = [ z_mean | z_log_var | z | 0 ]  with no lane shuffles.
    u = hv[:, :zw] + jnp.exp(hv[:, zw:]) * eps_ref[...]
    zlat_ref[...] = u                                  # single lane-dense 128-wide store

    # ---- decoder: Linear -> ReLU -> Linear -> ReLU -> Linear -> sigmoid ----
    # wd1 only has nonzero rows at [2*out_size, 3*out_size), i.e. it reads z out of u.
    d = layer(u, wd1, bd1)
    d = layer(d, wd2, bd2)
    xmean_ref[...] = jax.nn.sigmoid(mm(d, wd3) + bd3[...])


def vae_forward(x, eps, params, *, tile_b=None, use_bf16=True, elementwise_bf16=None):
    f32 = jnp.float32
    B, in_size = x.shape
    out_size = eps.shape[1]
    hidden = params["w1"].shape[1]

    if elementwise_bf16 is None:
        elementwise_bf16 = _default_elementwise_bf16()
    elementwise_bf16 = bool(elementwise_bf16 and use_bf16)

    slot = out_size
    zw = max(128, _round_up(3 * out_size, 128))        # packed latent width (lane-dense)
    out_cols = _round_up(in_size, 128)                 # lane-padded reconstruction width

    granule = 16 if use_bf16 else 8                    # bf16 packs 16 rows per sublane group
    if tile_b is None:
        tile_b = _choose_tile_b(B, num_cores=_num_tensorcores(), granule=granule)
    assert tile_b % granule == 0, f"tile_b must be a multiple of {granule}"
    Bp = tile_b * pl.cdiv(B, tile_b)
    grid = (Bp // tile_b,)

    if Bp != B:
        x = jnp.pad(x, ((0, Bp - B), (0, 0)))

    wdt = jnp.bfloat16 if use_bf16 else f32            # MXU input dtype
    adt = jnp.bfloat16 if elementwise_bf16 else f32    # hidden activation / hidden bias dtype
    wcast = lambda w: w.astype(wdt)

    # ---- packed head projection (all padding MUST stay exactly zero) ----
    wm, wv = params["wm"], params["wv"]
    bm, bv = params["bm"], params["bv"]
    whvA = (jnp.zeros((hidden, zw), f32)
            .at[:, 0:slot].set(wm)
            .at[:, slot:2 * slot].set(wv)
            .at[:, 2 * slot:3 * slot].set(wm))
    whvB = jnp.zeros((hidden, zw), f32).at[:, 2 * slot:3 * slot].set(wv)
    whv = wcast(jnp.concatenate([whvA, whvB], axis=1))
    bhvA = (jnp.zeros((1, zw), f32)
            .at[:, 0:slot].set(bm)
            .at[:, slot:2 * slot].set(bv)
            .at[:, 2 * slot:3 * slot].set(bm))
    bhvB = jnp.zeros((1, zw), f32).at[:, 2 * slot:3 * slot].set(bv)
    bhv = jnp.concatenate([bhvA, bhvB], axis=1)        # f32 (feeds exp + latent outputs)

    # Decoder input projection reads z out of lanes [2*slot, 3*slot); other rows are zero.
    wd1_p = wcast(jnp.zeros((zw, hidden), f32).at[2 * slot:3 * slot, :].set(params["wd1"]))
    # Decoder output projection lane-padded to a 128 multiple -> unmasked vst on xmean.
    wd3_p = wcast(jnp.pad(params["wd3"], ((0, 0), (0, out_cols - in_size))))
    bd3_p = jnp.pad(params["bd3"], ((0, 0), (0, out_cols - in_size))).astype(f32)

    plist = [
        wcast(params["w1"]), params["b1"].astype(adt),
        wcast(params["w2"]), params["b2"].astype(adt),
        wcast(params["w3"]), params["b3"].astype(adt),
        whv, bhv,
        wd1_p, params["bd1"].astype(adt),
        wcast(params["wd2"]), params["bd2"].astype(adt),
        wd3_p, bd3_p,
    ]

    # eps is placed directly into the z lanes [2*slot, 3*slot); padded rows/lanes stay 0.
    eps_s = jnp.zeros((Bp, zw), f32).at[:B, 2 * slot:3 * slot].set(eps)

    def batched(cols):
        return pl.BlockSpec((tile_b, cols), lambda i: (i, 0))

    def resident(arr):
        # Constant index_map -> fetched into VMEM once and kept resident across grid steps;
        # Buffered(1) -> single (not double) VMEM allocation (matters on v7x's 64 MiB VMEM).
        return pl.BlockSpec(arr.shape, lambda i: (0, 0),
                            pipeline_mode=pl.Buffered(buffer_count=1))

    in_specs = [batched(in_size), batched(zw)] + [resident(p) for p in plist]
    out_specs = [batched(out_cols), batched(zw)]
    out_shape = (jax.ShapeDtypeStruct((Bp, out_cols), f32),
                 jax.ShapeDtypeStruct((Bp, zw), f32))

    # ---- cost estimate + explicit VMEM limit ----
    mm_k_n = (in_size * hidden + 2 * hidden * hidden + hidden * (2 * zw)
              + zw * hidden + hidden * hidden + hidden * out_cols)
    flops = 2 * Bp * mm_k_n
    transcendentals = Bp * (zw + out_cols)             # exp lanes + sigmoid lanes
    param_bytes = sum(int(p.size) * p.dtype.itemsize for p in plist)
    bytes_accessed = param_bytes + 4 * Bp * (in_size + zw) + 4 * Bp * (out_cols + zw)

    def padded_bytes(a):
        r, c = a.shape
        return _round_up(r, 16) * _round_up(c, 128) * a.dtype.itemsize

    param_vmem = sum(padded_bytes(p) for p in plist)                           # single-buffered
    act_vmem = 2 * 4 * tile_b * (_round_up(in_size, 128) + 3 * zw + out_cols)  # double-buffered I/O
    work_vmem = 4 * tile_b * (3 * _round_up(hidden, 128) + 4 * zw)             # live intermediates
    vmem_limit = int(min(max(2 * (param_vmem + act_vmem + work_vmem) + (8 << 20), 32 << 20),
                         48 << 20))                    # stays under v7x's 64 MiB physical VMEM

    fn = pl.pallas_call(
        functools.partial(vae_kernel, zw=zw),
        out_shape=out_shape,
        grid_spec=pltpu.PrefetchScalarGridSpec(
            num_scalar_prefetch=0,
            grid=grid,
            in_specs=in_specs,
            out_specs=out_specs,
        ),
        compiler_params=pltpu.CompilerParams(
            dimension_semantics=("parallel",),         # batch tiles shard across v7x TCs
            vmem_limit_bytes=vmem_limit,
        ),
        cost_estimate=pl.CostEstimate(
            flops=int(flops),
            transcendentals=int(transcendentals),
            bytes_accessed=int(bytes_accessed),
        ),
    )
    xmean_p, zlat = fn(x, eps_s, *plist)

    x_mean = xmean_p[:B, :in_size]
    z_mean = zlat[:B, 0:out_size]
    z_log_var = zlat[:B, out_size:2 * out_size]
    z = zlat[:B, 2 * out_size:3 * out_size]
    return x_mean, z_mean, z_log_var, z


def init_params(key, in_size, hidden_size, out_size):
    """Deterministic synthetic parameters. Weights stored as (in_features, out_features)."""
    keys = jax.random.split(key, 16)
    ki = iter(keys)

    def lin(in_f, out_f):
        w = jax.random.normal(next(ki), (in_f, out_f), jnp.float32) * 0.05
        b = jax.random.normal(next(ki), (1, out_f), jnp.float32) * 0.01
        return w, b

    p = {}
    p["w1"], p["b1"] = lin(in_size, hidden_size)
    p["w2"], p["b2"] = lin(hidden_size, hidden_size)
    p["w3"], p["b3"] = lin(hidden_size, hidden_size)
    p["wm"], p["bm"] = lin(hidden_size, out_size)
    p["wv"], p["bv"] = lin(hidden_size, out_size)
    p["wd1"], p["bd1"] = lin(out_size, hidden_size)
    p["wd2"], p["bd2"] = lin(hidden_size, hidden_size)
    p["wd3"], p["bd3"] = lin(hidden_size, in_size)
    return p


def vae_reference(x, eps, p, *, matmul_dtype=jnp.float32, act_dtype=jnp.float32):
    """Pure-JAX reference; matmul_dtype / act_dtype mirror the kernel's casting points."""
    f32 = jnp.float32

    def mm(a, w):
        return jnp.dot(a.astype(matmul_dtype), w.astype(matmul_dtype),
                       preferred_element_type=f32)

    def layer(a, w, b, relu=True):
        y = mm(a, w).astype(act_dtype) + b.astype(act_dtype)
        return jnp.maximum(y, 0) if relu else y

    h = layer(x, p["w1"], p["b1"])
    h = layer(h, p["w2"], p["b2"])
    h = layer(h, p["w3"], p["b3"], relu=False)
    z_mean = (mm(h, p["wm"]) + p["bm"]).astype(f32)
    z_log_var = (mm(h, p["wv"]) + p["bv"]).astype(f32)
    z = z_mean + jnp.exp(z_log_var) * eps
    d = layer(z, p["wd1"], p["bd1"])
    d = layer(d, p["wd2"], p["bd2"])
    x_mean = jax.nn.sigmoid(mm(d, p["wd3"]) + p["bd3"])
    return x_mean, z_mean, z_log_var, z


if __name__ == "__main__":
    # Small shapes consistent with the module (in_size=784, hidden=400, out=20 scaled down).
    B, IN_SIZE, HIDDEN, OUT_SIZE = 16, 256, 128, 32

    key = jax.random.PRNGKey(0)
    kx, keps, kp = jax.random.split(key, 3)
    x = jax.random.uniform(kx, (B, IN_SIZE), jnp.float32)      # binarized-image-like input
    eps = jax.random.normal(keps, (B, OUT_SIZE), jnp.float32)  # reparameterization noise
    params = init_params(kp, IN_SIZE, HIDDEN, OUT_SIZE)

    ew_bf16 = _default_elementwise_bf16()                      # generation-dependent elementwise dtype
    outs = jax.block_until_ready(vae_forward(x, eps, params, elementwise_bf16=ew_bf16))

    adt = jnp.bfloat16 if ew_bf16 else jnp.float32
    ref_mirror = vae_reference(x, eps, params, matmul_dtype=jnp.bfloat16, act_dtype=adt)
    ref_f32 = vae_reference(x, eps, params)                    # full-precision spec

    tol_m = 2.5e-2 if ew_bf16 else 1e-3                        # bf16 activations -> 1-ulp rounding flips
    tol_f = 1e-1 if ew_bf16 else 5e-2
    for name, o, rm, rf in zip(("x_mean", "z_mean", "z_log_var", "z"), outs, ref_mirror, ref_f32):
        assert o.shape == rf.shape and o.dtype == jnp.float32
        assert jnp.allclose(o, rm, atol=tol_m, rtol=tol_m), f"{name}: mismatch vs mirrored reference"
        assert jnp.allclose(o, rf, atol=tol_f, rtol=tol_f), f"{name}: drift vs f32 reference"

    print("KERNEL_OK")
</pallas_src>

<mosaic_0001>
module attributes {stable_mosaic.version = 11 : i64} {
  func.func @vae_kernel(%arg0: i32, %arg1: memref<16x256xf32, #tpu.memory_space<vmem>>, %arg2: memref<16x128xf32, #tpu.memory_space<vmem>>, %arg3: memref<256x128xbf16, #tpu.memory_space<vmem>>, %arg4: memref<1x128xf32, #tpu.memory_space<vmem>>, %arg5: memref<128x128xbf16, #tpu.memory_space<vmem>>, %arg6: memref<1x128xf32, #tpu.memory_space<vmem>>, %arg7: memref<128x128xbf16, #tpu.memory_space<vmem>>, %arg8: memref<1x128xf32, #tpu.memory_space<vmem>>, %arg9: memref<128x256xbf16, #tpu.memory_space<vmem>>, %arg10: memref<1x256xf32, #tpu.memory_space<vmem>>, %arg11: memref<128x128xbf16, #tpu.memory_space<vmem>>, %arg12: memref<1x128xf32, #tpu.memory_space<vmem>>, %arg13: memref<128x128xbf16, #tpu.memory_space<vmem>>, %arg14: memref<1x128xf32, #tpu.memory_space<vmem>>, %arg15: memref<128x256xbf16, #tpu.memory_space<vmem>>, %arg16: memref<1x256xf32, #tpu.memory_space<vmem>>, %arg17: memref<16x256xf32, #tpu.memory_space<vmem>>, %arg18: memref<16x128xf32, #tpu.memory_space<vmem>>) attributes {dimension_semantics = [#tpu.dimension_semantics<parallel>], iteration_bounds = array<i64: 1>, scalar_prefetch = 0 : i64, scratch_operands = 0 : i64, tpu.core_type = #tpu.core_type<tc>, window_params = [{transform_indices = @transform_0, window_bounds = array<i64: 16, 256>}, {transform_indices = @transform_1, window_bounds = array<i64: 16, 128>}, {pipeline_mode = #tpu.pipeline_mode<synchronous>, transform_indices = @transform_2, window_bounds = array<i64: 256, 128>}, {pipeline_mode = #tpu.pipeline_mode<synchronous>, transform_indices = @transform_3, window_bounds = array<i64: 1, 128>}, {pipeline_mode = #tpu.pipeline_mode<synchronous>, transform_indices = @transform_4, window_bounds = array<i64: 128, 128>}, {pipeline_mode = #tpu.pipeline_mode<synchronous>, transform_indices = @transform_5, window_bounds = array<i64: 1, 128>}, {pipeline_mode = #tpu.pipeline_mode<synchronous>, transform_indices = @transform_6, window_bounds = array<i64: 128, 128>}, {pipeline_mode = #tpu.pipeline_mode<synchronous>, transform_indices = @transform_7, window_bounds = array<i64: 1, 128>}, {pipeline_mode = #tpu.pipeline_mode<synchronous>, transform_indices = @transform_8, window_bounds = array<i64: 128, 256>}, {pipeline_mode = #tpu.pipeline_mode<synchronous>, transform_indices = @transform_9, window_bounds = array<i64: 1, 256>}, {pipeline_mode = #tpu.pipeline_mode<synchronous>, transform_indices = @transform_10, window_bounds = array<i64: 128, 128>}, {pipeline_mode = #tpu.pipeline_mode<synchronous>, transform_indices = @transform_11, window_bounds = array<i64: 1, 128>}, {pipeline_mode = #tpu.pipeline_mode<synchronous>, transform_indices = @transform_12, window_bounds = array<i64: 128, 128>}, {pipeline_mode = #tpu.pipeline_mode<synchronous>, transform_indices = @transform_13, window_bounds = array<i64: 1, 128>}, {pipeline_mode = #tpu.pipeline_mode<synchronous>, transform_indices = @transform_14, window_bounds = array<i64: 128, 256>}, {pipeline_mode = #tpu.pipeline_mode<synchronous>, transform_indices = @transform_15, window_bounds = array<i64: 1, 256>}, {transform_indices = @transform_16, window_bounds = array<i64: 16, 256>}, {transform_indices = @transform_17, window_bounds = array<i64: 16, 128>}]} {
    %c0 = arith.constant 0 : index
    %c0_0 = arith.constant 0 : index
    %0 = vector.load %arg1[%c0, %c0_0] : memref<16x256xf32, #tpu.memory_space<vmem>>, vector<16x256xf32>
    %c0_1 = arith.constant 0 : index
    %c0_2 = arith.constant 0 : index
    %1 = vector.load %arg4[%c0_1, %c0_2] : memref<1x128xf32, #tpu.memory_space<vmem>>, vector<1x128xf32>
    %c0_3 = arith.constant 0 : index
    %c0_4 = arith.constant 0 : index
    %2 = vector.load %arg3[%c0_3, %c0_4] : memref<256x128xbf16, #tpu.memory_space<vmem>>, vector<256x128xbf16>
    %3 = arith.truncf %0 : vector<16x256xf32> to vector<16x256xbf16>
    %cst = arith.constant dense<0.000000e+00> : vector<16x128xf32>
    %4 = tpu.matmul %3, %2, %cst {dimension_numbers = #tpu.dot_dimension_numbers<[1], [0], [0], [1], [0, 0, 1, 1], [], []>} : vector<16x256xbf16>, vector<256x128xbf16>, vector<16x128xf32> -> vector<16x128xf32>
    %5 = vector.broadcast %1 : vector<1x128xf32> to vector<16x128xf32>
    %6 = arith.addf %4, %5 : vector<16x128xf32>
    %cst_5 = arith.constant 0.000000e+00 : f32
    %7 = vector.broadcast %cst_5 : f32 to vector<16x128xf32>
    %8 = arith.maximumf %6, %7 : vector<16x128xf32>
    %c0_6 = arith.constant 0 : index
    %c0_7 = arith.constant 0 : index
    %9 = vector.load %arg6[%c0_6, %c0_7] : memref<1x128xf32, #tpu.memory_space<vmem>>, vector<1x128xf32>
    %c0_8 = arith.constant 0 : index
    %c0_9 = arith.constant 0 : index
    %10 = vector.load %arg5[%c0_8, %c0_9] : memref<128x128xbf16, #tpu.memory_space<vmem>>, vector<128x128xbf16>
    %11 = arith.truncf %8 : vector<16x128xf32> to vector<16x128xbf16>
    %cst_10 = arith.constant dense<0.000000e+00> : vector<16x128xf32>
    %12 = tpu.matmul %11, %10, %cst_10 {dimension_numbers = #tpu.dot_dimension_numbers<[1], [0], [0], [1], [0, 0, 1, 1], [], []>} : vector<16x128xbf16>, vector<128x128xbf16>, vector<16x128xf32> -> vector<16x128xf32>
    %13 = vector.broadcast %9 : vector<1x128xf32> to vector<16x128xf32>
    %14 = arith.addf %12, %13 : vector<16x128xf32>
    %cst_11 = arith.constant 0.000000e+00 : f32
    %15 = vector.broadcast %cst_11 : f32 to vector<16x128xf32>
    %16 = arith.maximumf %14, %15 : vector<16x128xf32>
    %c0_12 = arith.constant 0 : index
    %c0_13 = arith.constant 0 : index
    %17 = vector.load %arg8[%c0_12, %c0_13] : memref<1x128xf32, #tpu.memory_space<vmem>>, vector<1x128xf32>
    %c0_14 = arith.constant 0 : index
    %c0_15 = arith.constant 0 : index
    %18 = vector.load %arg7[%c0_14, %c0_15] : memref<128x128xbf16, #tpu.memory_space<vmem>>, vector<128x128xbf16>
    %19 = arith.truncf %16 : vector<16x128xf32> to vector<16x128xbf16>
    %cst_16 = arith.constant dense<0.000000e+00> : vector<16x128xf32>
    %20 = tpu.matmul %19, %18, %cst_16 {dimension_numbers = #tpu.dot_dimension_numbers<[1], [0], [0], [1], [0, 0, 1, 1], [], []>} : vector<16x128xbf16>, vector<128x128xbf16>, vector<16x128xf32> -> vector<16x128xf32>
    %21 = vector.broadcast %17 : vector<1x128xf32> to vector<16x128xf32>
    %22 = arith.addf %20, %21 : vector<16x128xf32>
    %c0_17 = arith.constant 0 : index
    %c0_18 = arith.constant 0 : index
    %23 = vector.load %arg9[%c0_17, %c0_18] : memref<128x256xbf16, #tpu.memory_space<vmem>>, vector<128x256xbf16>
    %24 = arith.truncf %22 : vector<16x128xf32> to vector<16x128xbf16>
    %cst_19 = arith.constant dense<0.000000e+00> : vector<16x256xf32>
    %25 = tpu.matmul %24, %23, %cst_19 {dimension_numbers = #tpu.dot_dimension_numbers<[1], [0], [0], [1], [0, 0, 1, 1], [], []>} : vector<16x128xbf16>, vector<128x256xbf16>, vector<16x256xf32> -> vector<16x256xf32>
    %c0_20 = arith.constant 0 : index
    %c0_21 = arith.constant 0 : index
    %26 = vector.load %arg10[%c0_20, %c0_21] : memref<1x256xf32, #tpu.memory_space<vmem>>, vector<1x256xf32>
    %27 = vector.broadcast %26 : vector<1x256xf32> to vector<16x256xf32>
    %28 = arith.addf %25, %27 : vector<16x256xf32>
    %29 = vector.extract_strided_slice %28 {offsets = [0, 0], sizes = [16, 128], strides = [1, 1]} : vector<16x256xf32> to vector<16x128xf32>
    %30 = vector.extract_strided_slice %28 {offsets = [0, 128], sizes = [16, 128], strides = [1, 1]} : vector<16x256xf32> to vector<16x128xf32>
    %31 = math.exp %30 : vector<16x128xf32>
    %c0_22 = arith.constant 0 : index
    %c0_23 = arith.constant 0 : index
    %32 = vector.load %arg2[%c0_22, %c0_23] : memref<16x128xf32, #tpu.memory_space<vmem>>, vector<16x128xf32>
    %33 = arith.mulf %31, %32 : vector<16x128xf32>
    %34 = arith.addf %29, %33 : vector<16x128xf32>
    %c0_24 = arith.constant 0 : index
    %c0_25 = arith.constant 0 : index
    %35 = vector.load %arg18[%c0_24, %c0_25] : memref<16x128xf32, #tpu.memory_space<vmem>>, vector<16x128xf32>
    tpu.vector_store %arg18[%c0_24, %c0_25], %34 {strides = array<i32>} : memref<16x128xf32, #tpu.memory_space<vmem>>, vector<16x128xf32>,
    %c0_26 = arith.constant 0 : index
    %c0_27 = arith.constant 0 : index
    %36 = vector.load %arg12[%c0_26, %c0_27] : memref<1x128xf32, #tpu.memory_space<vmem>>, vector<1x128xf32>
    %c0_28 = arith.constant 0 : index
    %c0_29 = arith.constant 0 : index
    %37 = vector.load %arg11[%c0_28, %c0_29] : memref<128x128xbf16, #tpu.memory_space<vmem>>, vector<128x128xbf16>
    %38 = arith.truncf %34 : vector<16x128xf32> to vector<16x128xbf16>
    %cst_30 = arith.constant dense<0.000000e+00> : vector<16x128xf32>
    %39 = tpu.matmul %38, %37, %cst_30 {dimension_numbers = #tpu.dot_dimension_numbers<[1], [0], [0], [1], [0, 0, 1, 1], [], []>} : vector<16x128xbf16>, vector<128x128xbf16>, vector<16x128xf32> -> vector<16x128xf32>
    %40 = vector.broadcast %36 : vector<1x128xf32> to vector<16x128xf32>
    %41 = arith.addf %39, %40 : vector<16x128xf32>
    %cst_31 = arith.constant 0.000000e+00 : f32
    %42 = vector.broadcast %cst_31 : f32 to vector<16x128xf32>
    %43 = arith.maximumf %41, %42 : vector<16x128xf32>
    %c0_32 = arith.constant 0 : index
    %c0_33 = arith.constant 0 : index
    %44 = vector.load %arg14[%c0_32, %c0_33] : memref<1x128xf32, #tpu.memory_space<vmem>>, vector<1x128xf32>
    %c0_34 = arith.constant 0 : index
    %c0_35 = arith.constant 0 : index
    %45 = vector.load %arg13[%c0_34, %c0_35] : memref<128x128xbf16, #tpu.memory_space<vmem>>, vector<128x128xbf16>
    %46 = arith.truncf %43 : vector<16x128xf32> to vector<16x128xbf16>
    %cst_36 = arith.constant dense<0.000000e+00> : vector<16x128xf32>
    %47 = tpu.matmul %46, %45, %cst_36 {dimension_numbers = #tpu.dot_dimension_numbers<[1], [0], [0], [1], [0, 0, 1, 1], [], []>} : vector<16x128xbf16>, vector<128x128xbf16>, vector<16x128xf32> -> vector<16x128xf32>
    %48 = vector.broadcast %44 : vector<1x128xf32> to vector<16x128xf32>
    %49 = arith.addf %47, %48 : vector<16x128xf32>
    %cst_37 = arith.constant 0.000000e+00 : f32
    %50 = vector.broadcast %cst_37 : f32 to vector<16x128xf32>
    %51 = arith.maximumf %49, %50 : vector<16x128xf32>
    %c0_38 = arith.constant 0 : index
    %c0_39 = arith.constant 0 : index
    %52 = vector.load %arg15[%c0_38, %c0_39] : memref<128x256xbf16, #tpu.memory_space<vmem>>, vector<128x256xbf16>
    %53 = arith.truncf %51 : vector<16x128xf32> to vector<16x128xbf16>
    %cst_40 = arith.constant dense<0.000000e+00> : vector<16x256xf32>
    %54 = tpu.matmul %53, %52, %cst_40 {dimension_numbers = #tpu.dot_dimension_numbers<[1], [0], [0], [1], [0, 0, 1, 1], [], []>} : vector<16x128xbf16>, vector<128x256xbf16>, vector<16x256xf32> -> vector<16x256xf32>
    %c0_41 = arith.constant 0 : index
    %c0_42 = arith.constant 0 : index
    %55 = vector.load %arg16[%c0_41, %c0_42] : memref<1x256xf32, #tpu.memory_space<vmem>>, vector<1x256xf32>
    %56 = vector.broadcast %55 : vector<1x256xf32> to vector<16x256xf32>
    %57 = arith.addf %54, %56 : vector<16x256xf32>
    %58 = arith.negf %57 : vector<16x256xf32>
    %59 = math.exp %58 : vector<16x256xf32>
    %cst_43 = arith.constant 1.000000e+00 : f32
    %60 = vector.broadcast %cst_43 : f32 to vector<16x256xf32>
    %61 = arith.addf %60, %59 : vector<16x256xf32>
    %62 = arith.divf %60, %61 : vector<16x256xf32>
    %c0_44 = arith.constant 0 : index
    %c0_45 = arith.constant 0 : index
    %63 = vector.load %arg17[%c0_44, %c0_45] : memref<16x256xf32, #tpu.memory_space<vmem>>, vector<16x256xf32>
    tpu.vector_store %arg17[%c0_44, %c0_45], %62 {strides = array<i32>} : memref<16x256xf32, #tpu.memory_space<vmem>>, vector<16x256xf32>,
    return
  }
  func.func @transform_0(%arg0: i32) -> (i32, i32) {
    %c0_i32 = arith.constant 0 : i32
    %c0_i32_0 = arith.constant 0 : i32
    return %arg0, %c0_i32 : i32, i32
  }
  func.func @transform_1(%arg0: i32) -> (i32, i32) {
    %c0_i32 = arith.constant 0 : i32
    %c0_i32_0 = arith.constant 0 : i32
    return %arg0, %c0_i32 : i32, i32
  }
  func.func @transform_2(%arg0: i32) -> (i32, i32) {
    %c0_i32 = arith.constant 0 : i32
    %c0_i32_0 = arith.constant 0 : i32
    %c0_i32_1 = arith.constant 0 : i32
    return %c0_i32, %c0_i32_0 : i32, i32
  }
  func.func @transform_3(%arg0: i32) -> (i32, i32) {
    %c0_i32 = arith.constant 0 : i32
    %c0_i32_0 = arith.constant 0 : i32
    %c0_i32_1 = arith.constant 0 : i32
    return %c0_i32, %c0_i32_0 : i32, i32
  }
  func.func @transform_4(%arg0: i32) -> (i32, i32) {
    %c0_i32 = arith.constant 0 : i32
    %c0_i32_0 = arith.constant 0 : i32
    %c0_i32_1 = arith.constant 0 : i32
    return %c0_i32, %c0_i32_0 : i32, i32
  }
  func.func @transform_5(%arg0: i32) -> (i32, i32) {
    %c0_i32 = arith.constant 0 : i32
    %c0_i32_0 = arith.constant 0 : i32
    %c0_i32_1 = arith.constant 0 : i32
    return %c0_i32, %c0_i32_0 : i32, i32
  }
  func.func @transform_6(%arg0: i32) -> (i32, i32) {
    %c0_i32 = arith.constant 0 : i32
    %c0_i32_0 = arith.constant 0 : i32
    %c0_i32_1 = arith.constant 0 : i32
    return %c0_i32, %c0_i32_0 : i32, i32
  }
  func.func @transform_7(%arg0: i32) -> (i32, i32) {
    %c0_i32 = arith.constant 0 : i32
    %c0_i32_0 = arith.constant 0 : i32
    %c0_i32_1 = arith.constant 0 : i32
    return %c0_i32, %c0_i32_0 : i32, i32
  }
  func.func @transform_8(%arg0: i32) -> (i32, i32) {
    %c0_i32 = arith.constant 0 : i32
    %c0_i32_0 = arith.constant 0 : i32
    %c0_i32_1 = arith.constant 0 : i32
    return %c0_i32, %c0_i32_0 : i32, i32
  }
  func.func @transform_9(%arg0: i32) -> (i32, i32) {
    %c0_i32 = arith.constant 0 : i32
    %c0_i32_0 = arith.constant 0 : i32
    %c0_i32_1 = arith.constant 0 : i32
    return %c0_i32, %c0_i32_0 : i32, i32
  }
  func.func @transform_10(%arg0: i32) -> (i32, i32) {
    %c0_i32 = arith.constant 0 : i32
    %c0_i32_0 = arith.constant 0 : i32
    %c0_i32_1 = arith.constant 0 : i32
    return %c0_i32, %c0_i32_0 : i32, i32
  }
  func.func @transform_11(%arg0: i32) -> (i32, i32) {
    %c0_i32 = arith.constant 0 : i32
    %c0_i32_0 = arith.constant 0 : i32
    %c0_i32_1 = arith.constant 0 : i32
    return %c0_i32, %c0_i32_0 : i32, i32
  }
  func.func @transform_12(%arg0: i32) -> (i32, i32) {
    %c0_i32 = arith.constant 0 : i32
    %c0_i32_0 = arith.constant 0 : i32
    %c0_i32_1 = arith.constant 0 : i32
    return %c0_i32, %c0_i32_0 : i32, i32
  }
  func.func @transform_13(%arg0: i32) -> (i32, i32) {
    %c0_i32 = arith.constant 0 : i32
    %c0_i32_0 = arith.constant 0 : i32
    %c0_i32_1 = arith.constant 0 : i32
    return %c0_i32, %c0_i32_0 : i32, i32
  }
  func.func @transform_14(%arg0: i32) -> (i32, i32) {
    %c0_i32 = arith.constant 0 : i32
    %c0_i32_0 = arith.constant 0 : i32
    %c0_i32_1 = arith.constant 0 : i32
    return %c0_i32, %c0_i32_0 : i32, i32
  }
  func.func @transform_15(%arg0: i32) -> (i32, i32) {
    %c0_i32 = arith.constant 0 : i32
    %c0_i32_0 = arith.constant 0 : i32
    %c0_i32_1 = arith.constant 0 : i32
    return %c0_i32, %c0_i32_0 : i32, i32
  }
  func.func @transform_16(%arg0: i32) -> (i32, i32) {
    %c0_i32 = arith.constant 0 : i32
    %c0_i32_0 = arith.constant 0 : i32
    return %arg0, %c0_i32 : i32, i32
  }
  func.func @transform_17(%arg0: i32) -> (i32, i32) {
    %c0_i32 = arith.constant 0 : i32
    %c0_i32_0 = arith.constant 0 : i32
    return %arg0, %c0_i32 : i32, i32
  }
}

</mosaic_0001>

<llo_original>
// kernel: tpu_custom_call.1
$region0: #{tpu_custom_call.1}
  #allocation0 [shape = 'u32[]', space=smem, size = 0x4, offset = 0x4, fixed_abs, tag = 'smem constant byte address 0x4 - core index']
  #allocation1 [shape = 'u32[144,128]{1,0:T(1,128)}', space=vmem, size = 0x12000, scoped, tag = 'internal scratch']
  %s0 = inlined_call_operand.hbm [shape: f32[16,256], index: 0, kind: input, shape index: {}]
  %s1 = inlined_call_operand.hbm [shape: f32[16,128], index: 1, kind: input, shape index: {}]
  %s2 = inlined_call_operand.hbm [shape: bf16[256,128], index: 2, kind: input, shape index: {}]
  %s3 = inlined_call_operand.vmem [shape: f32[1,128], index: 3, kind: input, shape index: {}]
  %s4 = inlined_call_operand.hbm [shape: bf16[128,128], index: 4, kind: input, shape index: {}]
  %s5 = inlined_call_operand.vmem [shape: f32[1,128], index: 5, kind: input, shape index: {}]
  %s6 = inlined_call_operand.hbm [shape: bf16[128,128], index: 6, kind: input, shape index: {}]
  %s7 = inlined_call_operand.vmem [shape: f32[1,128], index: 7, kind: input, shape index: {}]
  %s8 = inlined_call_operand.hbm [shape: bf16[128,256], index: 8, kind: input, shape index: {}]
  %s9 = inlined_call_operand.vmem [shape: f32[1,256], index: 9, kind: input, shape index: {}]
  %s10 = inlined_call_operand.hbm [shape: bf16[128,128], index: 10, kind: input, shape index: {}]
  %s11 = inlined_call_operand.vmem [shape: f32[1,128], index: 11, kind: input, shape index: {}]
  %s12 = inlined_call_operand.hbm [shape: bf16[128,128], index: 12, kind: input, shape index: {}]
  %s13 = inlined_call_operand.vmem [shape: f32[1,128], index: 13, kind: input, shape index: {}]
  %s14 = inlined_call_operand.hbm [shape: bf16[128,256], index: 14, kind: input, shape index: {}]
  %s15 = inlined_call_operand.vmem [shape: f32[1,256], index: 15, kind: input, shape index: {}]
  %s16 = inlined_call_operand.hbm [shape: f32[16,256], index: 16, kind: output, shape index: {0}]
  %s17 = inlined_call_operand.hbm [shape: f32[16,128], index: 17, kind: output, shape index: {1}]
  %18 = xla_tuple %s16, %s17
  %s19 = sld [smem:[#allocation0]]
  $region118: #{tpu_custom_call.1} parent=0
    _
  %s21 = ssub.s32 1, %s19
  %s22 = scalar_select 0, %s21, %s19
  $region1: #{tpu_custom_call.1} parent=0
    #allocation2 [shape = 'u8[16384]{0}', space=vmem, size = 0x4000, scoped, tag = 'input window, operand 0, single buffered']
    #allocation3 [shape = 's32[1]{0}', space=sflag, size = 0x4, scoped, tag = 'scoped memory for tpu_custom_call.1']
    #allocation4 [shape = 's32[1]{0}', space=sflag, size = 0x4, scoped, tag = 'scoped memory for tpu_custom_call.1']
    #allocation5 [shape = 'u8[8192]{0}', space=vmem, size = 0x2000, scoped, tag = 'input window, operand 1, single buffered']
    #allocation6 [shape = 's32[1]{0}', space=sflag, size = 0x4, scoped, tag = 'scoped memory for tpu_custom_call.1']
    #allocation7 [shape = 'u8[65536]{0}', space=vmem, size = 0x10000, scoped, tag = 'input window, operand 2, single buffered']
    #allocation8 [shape = 'u8[32768]{0}', space=vmem, size = 0x8000, scoped, tag = 'input window, operand 4, single buffered']
    #allocation9 [shape = 's32[1]{0}', space=sflag, size = 0x4, scoped, tag = 'scoped memory for tpu_custom_call.1']
    #allocation10 [shape = 'u8[32768]{0}', space=vmem, size = 0x8000, scoped, tag = 'input window, operand 6, single buffered']
    #allocation11 [shape = 'u8[65536]{0}', space=vmem, size = 0x10000, scoped, tag = 'input window, operand 8, single buffered']
    #allocation12 [shape = 's32[1]{0}', space=sflag, size = 0x4, scoped, tag = 'scoped memory for tpu_custom_call.1']
    #allocation13 [shape = 'u8[32768]{0}', space=vmem, size = 0x8000, scoped, tag = 'input window, operand 10, single buffered']
    #allocation14 [shape = 'u8[32768]{0}', space=vmem, size = 0x8000, scoped, tag = 'input window, operand 12, single buffered']
    #allocation15 [shape = 's32[1]{0}', space=sflag, size = 0x4, scoped, tag = 'scoped memory for tpu_custom_call.1']
    #allocation16 [shape = 'u8[65536]{0}', space=vmem, size = 0x10000, scoped, tag = 'input window, operand 14, single buffered']
    #allocation17 [shape = 'u8[16384]{0}', space=vmem, size = 0x4000, scoped, tag = 'output window, operand 0, single buffered']
    #allocation18 [shape = 'u8[8192]{0}', space=vmem, size = 0x2000, scoped, tag = 'output window, operand 1, single buffered']
    #allocation19 [shape = 's32[1]{0}', space=sflag, size = 0x4, scoped, tag = 'scoped memory for tpu_custom_call.1']
    %23 = vsyncpa [#allocation3], 0
    %24 = vsyncpa [#allocation6], 0
    %25 = vsyncpa [#allocation9], 0
    %26 = vsyncpa [#allocation12], 0
    %27 = vsyncpa [#allocation15], 0
    %28 = vsyncpa [#allocation4], 0
    %29 = vsyncpa [#allocation19], 0
    // Predicated region
    $region2: #{tpu_custom_call.1} parent=1 // pred_check
      _
    $region3: #{tpu_custom_call.1} parent=1 // pred_check_branch
      %31 = sbr.rel (0) target = $region5
    $region4: #{tpu_custom_call.1} parent=1 // pred_region
      %s33 = ssub.s32 512, 512
      %34 = vsyncadd [#allocation3], %s33
      %s35 = sshll.u32 [#allocation2], 4
      %s36 = int_to_ptr.vmem [resolvable:$true] %s35
      %41 = dma.hbm_to_vmem [thread:$0]  %s0, 512, %s36, [#allocation3], 256, 256, 16
    $region5: #{tpu_custom_call.1} parent=1 // pred_fallthru
      _
    // Predicated region
    $region6: #{tpu_custom_call.1} parent=1 // pred_check
      _
    $region7: #{tpu_custom_call.1} parent=1 // pred_check_branch
      %43 = sbr.rel (0) target = $region9
    $region8: #{tpu_custom_call.1} parent=1 // pred_region
      %s45 = ssub.s32 256, 256
      %46 = vsyncadd [#allocation6], %s45
      %s47 = sshll.u32 [#allocation5], 4
      %s48 = int_to_ptr.vmem [resolvable:$true] %s47
      %53 = dma.hbm_to_vmem [thread:$0]  %s1, 256, %s48, [#allocation6], 128, 128, 8
    $region9: #{tpu_custom_call.1} parent=1 // pred_fallthru
      _
    // Predicated region
    $region10: #{tpu_custom_call.1} parent=1 // pred_check
      _
    $region11: #{tpu_custom_call.1} parent=1 // pred_check_branch
      %55 = sbr.rel (0) target = $region13
    $region12: #{tpu_custom_call.1} parent=1 // pred_region
      %s57 = ssub.s32 2048, 2048
      %58 = vsyncadd [#allocation6], %s57
      %s59 = sshll.u32 [#allocation7], 4
      %s60 = int_to_ptr.vmem [resolvable:$true] %s59
      %65 = dma.hbm_to_vmem [thread:$0]  %s2, 2048, %s60, [#allocation6], 64, 64, 4
    $region13: #{tpu_custom_call.1} parent=1 // pred_fallthru
      _
    // Predicated region
    $region14: #{tpu_custom_call.1} parent=1 // pred_check
      _
    $region15: #{tpu_custom_call.1} parent=1 // pred_check_branch
      %67 = sbr.rel (0) target = $region17
    $region16: #{tpu_custom_call.1} parent=1 // pred_region
      _
    $region17: #{tpu_custom_call.1} parent=1 // pred_fallthru
      _
    // Predicated region
    $region18: #{tpu_custom_call.1} parent=1 // pred_check
      _
    $region19: #{tpu_custom_call.1} parent=1 // pred_check_branch
      %69 = sbr.rel (0) target = $region21
    $region20: #{tpu_custom_call.1} parent=1 // pred_region
      %s71 = ssub.s32 1024, 1024
      %72 = vsyncadd [#allocation9], %s71
      %s73 = sshll.u32 [#allocation8], 4
      %s74 = int_to_ptr.vmem [resolvable:$true] %s73
      %79 = dma.hbm_to_vmem [thread:$0]  %s4, 1024, %s74, [#allocation9], 64, 64, 4
    $region21: #{tpu_custom_call.1} parent=1 // pred_fallthru
      _
    // Predicated region
    $region22: #{tpu_custom_call.1} parent=1 // pred_check
      _
    $region23: #{tpu_custom_call.1} parent=1 // pred_check_branch
      %81 = sbr.rel (0) target = $region25
    $region24: #{tpu_custom_call.1} parent=1 // pred_region
      _
    $region25: #{tpu_custom_call.1} parent=1 // pred_fallthru
      _
    // Predicated region
    $region26: #{tpu_custom_call.1} parent=1 // pred_check
      _
    $region27: #{tpu_custom_call.1} parent=1 // pred_check_branch
      %83 = sbr.rel (0) target = $region29
    $region28: #{tpu_custom_call.1} parent=1 // pred_region
      %s85 = ssub.s32 1024, 1024
      %86 = vsyncadd [#allocation9], %s85
      %s87 = sshll.u32 [#allocation10], 4
      %s88 = int_to_ptr.vmem [resolvable:$true] %s87
      %93 = dma.hbm_to_vmem [thread:$0]  %s6, 1024, %s88, [#allocation9], 64, 64, 4
    $region29: #{tpu_custom_call.1} parent=1 // pred_fallthru
      _
    // Predicated region
    $region30: #{tpu_custom_call.1} parent=1 // pred_check
      _
    $region31: #{tpu_custom_call.1} parent=1 // pred_check_branch
      %95 = sbr.rel (0) target = $region33
    $region32: #{tpu_custom_call.1} parent=1 // pred_region
      _
    $region33: #{tpu_custom_call.1} parent=1 // pred_fallthru
      _
    // Predicated region
    $region34: #{tpu_custom_call.1} parent=1 // pred_check
      _
    $region35: #{tpu_custom_call.1} parent=1 // pred_check_branch
      %97 = sbr.rel (0) target = $region37
    $region36: #{tpu_custom_call.1} parent=1 // pred_region
      %s99 = ssub.s32 2048, 2048
      %100 = vsyncadd [#allocation12], %s99
      %s101 = sshll.u32 [#allocation11], 4
      %s102 = int_to_ptr.vmem [resolvable:$true] %s101
      %107 = dma.hbm_to_vmem [thread:$0]  %s8, 2048, %s102, [#allocation12], 128, 128, 8
    $region37: #{tpu_custom_call.1} parent=1 // pred_fallthru
      _
    // Predicated region
    $region38: #{tpu_custom_call.1} parent=1 // pred_check
      _
    $region39: #{tpu_custom_call.1} parent=1 // pred_check_branch
      %109 = sbr.rel (0) target = $region41
    $region40: #{tpu_custom_call.1} parent=1 // pred_region
      _
    $region41: #{tpu_custom_call.1} parent=1 // pred_fallthru
      _
    // Predicated region
    $region42: #{tpu_custom_call.1} parent=1 // pred_check
      _
    $region43: #{tpu_custom_call.1} parent=1 // pred_check_branch
      %111 = sbr.rel (0) target = $region45
    $region44: #{tpu_custom_call.1} parent=1 // pred_region
      %s113 = ssub.s32 1024, 1024
      %114 = vsyncadd [#allocation12], %s113
      %s115 = sshll.u32 [#allocation13], 4
      %s116 = int_to_ptr.vmem [resolvable:$true] %s115
      %121 = dma.hbm_to_vmem [thread:$0]  %s10, 1024, %s116, [#allocation12], 64, 64, 4
    $region45: #{tpu_custom_call.1} parent=1 // pred_fallthru
      _
    // Predicated region
    $region46: #{tpu_custom_call.1} parent=1 // pred_check
      _
    $region47: #{tpu_custom_call.1} parent=1 // pred_check_branch
      %123 = sbr.rel (0) target = $region49
    $region48: #{tpu_custom_call.1} parent=1 // pred_region
      _
    $region49: #{tpu_custom_call.1} parent=1 // pred_fallthru
      _
    // Predicated region
    $region50: #{tpu_custom_call.1} parent=1 // pred_check
      _
    $region51: #{tpu_custom_call.1} parent=1 // pred_check_branch
      %125 = sbr.rel (0) target = $region53
    $region52: #{tpu_custom_call.1} parent=1 // pred_region
      %s127 = ssub.s32 1024, 1024
      %128 = vsyncadd [#allocation15], %s127
      %s129 = sshll.u32 [#allocation14], 4
      %s130 = int_to_ptr.vmem [resolvable:$true] %s129
      %135 = dma.hbm_to_vmem [thread:$0]  %s12, 1024, %s130, [#allocation15], 64, 64, 4
    $region53: #{tpu_custom_call.1} parent=1 // pred_fallthru
      _
    // Predicated region
    $region54: #{tpu_custom_call.1} parent=1 // pred_check
      _
    $region55: #{tpu_custom_call.1} parent=1 // pred_check_branch
      %137 = sbr.rel (0) target = $region57
    $region56: #{tpu_custom_call.1} parent=1 // pred_region
      _
    $region57: #{tpu_custom_call.1} parent=1 // pred_fallthru
      _
    // Predicated region
    $region58: #{tpu_custom_call.1} parent=1 // pred_check
      _
    $region59: #{tpu_custom_call.1} parent=1 // pred_check_branch
      %139 = sbr.rel (0) target = $region61
    $region60: #{tpu_custom_call.1} parent=1 // pred_region
      %s141 = ssub.s32 2048, 2048
      %142 = vsyncadd [#allocation15], %s141
      %s143 = sshll.u32 [#allocation16], 4
      %s144 = int_to_ptr.vmem [resolvable:$true] %s143
      %149 = dma.hbm_to_vmem [thread:$0]  %s14, 2048, %s144, [#allocation15], 128, 128, 8
    $region61: #{tpu_custom_call.1} parent=1 // pred_fallthru
      _
    // Predicated region
    $region62: #{tpu_custom_call.1} parent=1 // pred_check
      _
    $region63: #{tpu_custom_call.1} parent=1 // pred_check_branch
      %151 = sbr.rel (0) target = $region65
    $region64: #{tpu_custom_call.1} parent=1 // pred_region
      _
    $region65: #{tpu_custom_call.1} parent=1 // pred_fallthru
      _
    // Predicated region
    $region66: #{tpu_custom_call.1} parent=1 // pred_check
      _
    $region67: #{tpu_custom_call.1} parent=1 // pred_check_branch
      %153 = sbr.rel (0) target = $region69
    $region68: #{tpu_custom_call.1} parent=1 // pred_region
      %154 = dma.done [#allocation3], 512
    $region69: #{tpu_custom_call.1} parent=1 // pred_fallthru
      _
    // Predicated region
    $region70: #{tpu_custom_call.1} parent=1 // pred_check
      _
    $region71: #{tpu_custom_call.1} parent=1 // pred_check_branch
      %156 = sbr.rel (0) target = $region73
    $region72: #{tpu_custom_call.1} parent=1 // pred_region
      %157 = dma.done [#allocation6], 256
    $region73: #{tpu_custom_call.1} parent=1 // pred_fallthru
      _
    // Predicated region
    $region74: #{tpu_custom_call.1} parent=1 // pred_check
      _
    $region75: #{tpu_custom_call.1} parent=1 // pred_check_branch
      %159 = sbr.rel (0) target = $region77
    $region76: #{tpu_custom_call.1} parent=1 // pred_region
      %160 = dma.done [#allocation6], 2048
    $region77: #{tpu_custom_call.1} parent=1 // pred_fallthru
      _
    // Predicated region
    $region78: #{tpu_custom_call.1} parent=1 // pred_check
      _
    $region79: #{tpu_custom_call.1} parent=1 // pred_check_branch
      %162 = sbr.rel (0) target = $region81
    $region80: #{tpu_custom_call.1} parent=1 // pred_region
      %163 = dma.done [#allocation9], 1024
    $region81: #{tpu_custom_call.1} parent=1 // pred_fallthru
      _
    // Predicated region
    $region82: #{tpu_custom_call.1} parent=1 // pred_check
      _
    $region83: #{tpu_custom_call.1} parent=1 // pred_check_branch
      %165 = sbr.rel (0) target = $region85
    $region84: #{tpu_custom_call.1} parent=1 // pred_region
      %166 = dma.done [#allocation9], 1024
    $region85: #{tpu_custom_call.1} parent=1 // pred_fallthru
      _
    // Predicated region
    $region86: #{tpu_custom_call.1} parent=1 // pred_check
      _
    $region87: #{tpu_custom_call.1} parent=1 // pred_check_branch
      %168 = sbr.rel (0) target = $region89
    $region88: #{tpu_custom_call.1} parent=1 // pred_region
      %169 = dma.done [#allocation12], 2048
    $region89: #{tpu_custom_call.1} parent=1 // pred_fallthru
      _
    // Predicated region
    $region90: #{tpu_custom_call.1} parent=1 // pred_check
      _
    $region91: #{tpu_custom_call.1} parent=1 // pred_check_branch
      %171 = sbr.rel (0) target = $region93
    $region92: #{tpu_custom_call.1} parent=1 // pred_region
      %172 = dma.done [#allocation12], 1024
    $region93: #{tpu_custom_call.1} parent=1 // pred_fallthru
      _
    // Predicated region
    $region94: #{tpu_custom_call.1} parent=1 // pred_check
      _
    $region95: #{tpu_custom_call.1} parent=1 // pred_check_branch
      %174 = sbr.rel (0) target = $region97
    $region96: #{tpu_custom_call.1} parent=1 // pred_region
      %175 = dma.done [#allocation15], 1024
    $region97: #{tpu_custom_call.1} parent=1 // pred_fallthru
      _
    // Predicated region
    $region98: #{tpu_custom_call.1} parent=1 // pred_check
      _
    $region99: #{tpu_custom_call.1} parent=1 // pred_check_branch
      %177 = sbr.rel (0) target = $region101
    $region100: #{tpu_custom_call.1} parent=1 // pred_region
      %178 = dma.done [#allocation15], 2048
    $region101: #{tpu_custom_call.1} parent=1 // pred_fallthru
      _
    %v180 = vld [vmem:[#allocation2] sm:$0xff]
    %v181 = vld [vmem:[#allocation2 + $0x8] sm:$0xff]
    %v182 = vld [vmem:[#allocation2 + $0x10] sm:$0xff]
    %v183 = vld [vmem:[#allocation2 + $0x18] sm:$0xff]
    %v184 = vld [vmem:[%s3] sm:$0x1]
    %v185 = vld [vmem:[#allocation7] sm:$0xf]
    %v186 = vld [vmem:[#allocation7 + $0x4] sm:$0xf]
    %v187 = vld [vmem:[#allocation7 + $0x8] sm:$0xf]
    %v188 = vld [vmem:[#allocation7 + $0xc] sm:$0xf]
    %v189 = vld [vmem:[#allocation7 + $0x10] sm:$0xf]
    %v190 = vld [vmem:[#allocation7 + $0x14] sm:$0xf]
    %v191 = vld [vmem:[#allocation7 + $0x18] sm:$0xf]
    %v192 = vld [vmem:[#allocation7 + $0x1c] sm:$0xf]
    %v193 = vld [vmem:[#allocation7 + $0x20] sm:$0xf]
    %v194 = vld [vmem:[#allocation7 + $0x24] sm:$0xf]
    %v195 = vld [vmem:[#allocation7 + $0x28] sm:$0xf]
    %v196 = vld [vmem:[#allocation7 + $0x2c] sm:$0xf]
    %v197 = vld [vmem:[#allocation7 + $0x30] sm:$0xf]
    %v198 = vld [vmem:[#allocation7 + $0x34] sm:$0xf]
    %v199 = vld [vmem:[#allocation7 + $0x38] sm:$0xf]
    %v200 = vld [vmem:[#allocation7 + $0x3c] sm:$0xf]
    %v201 = vld [vmem:[#allocation7 + $0x40] sm:$0xf]
    %v202 = vld [vmem:[#allocation7 + $0x44] sm:$0xf]
    %v203 = vld [vmem:[#allocation7 + $0x48] sm:$0xf]
    %v204 = vld [vmem:[#allocation7 + $0x4c] sm:$0xf]
    %v205 = vld [vmem:[#allocation7 + $0x50] sm:$0xf]
    %v206 = vld [vmem:[#allocation7 + $0x54] sm:$0xf]
    %v207 = vld [vmem:[#allocation7 + $0x58] sm:$0xf]
    %v208 = vld [vmem:[#allocation7 + $0x5c] sm:$0xf]
    %v209 = vld [vmem:[#allocation7 + $0x60] sm:$0xf]
    %v210 = vld [vmem:[#allocation7 + $0x64] sm:$0xf]
    %v211 = vld [vmem:[#allocation7 + $0x68] sm:$0xf]
    %v212 = vld [vmem:[#allocation7 + $0x6c] sm:$0xf]
    %v213 = vld [vmem:[#allocation7 + $0x70] sm:$0xf]
    %v214 = vld [vmem:[#allocation7 + $0x74] sm:$0xf]
    %v215 = vld [vmem:[#allocation7 + $0x78] sm:$0xf]
    %v216 = vld [vmem:[#allocation7 + $0x7c] sm:$0xf]
    %v217 = vpack.c.bf16 %v182, %v180
    %v218 = vpack.c.bf16 %v183, %v181
    %v220 = vlaneseq
    %v221 = vshrl.u32 %v220, 7
    %v222 = vsub.s32 0, %v221
    %v223 = vrot.slane %v184, %v222
    %v257 = vunpack.c.l.b16 %v185
    %v258 = vunpack.c.l.b16 %v186
    %v259 = vunpack.c.l.b16 %v187
    %v260 = vunpack.c.l.b16 %v188
    %v261 = vunpack.c.l.b16 %v189
    %v262 = vunpack.c.l.b16 %v190
    %v263 = vunpack.c.l.b16 %v191
    %v264 = vunpack.c.l.b16 %v192
    %v265 = vunpack.c.l.b16 %v193
    %v266 = vunpack.c.l.b16 %v194
    %v267 = vunpack.c.l.b16 %v195
    %v268 = vunpack.c.l.b16 %v196
    %v269 = vunpack.c.l.b16 %v197
    %v270 = vunpack.c.l.b16 %v198
    %v271 = vunpack.c.l.b16 %v199
    %v272 = vunpack.c.l.b16 %v200
    %v273 = vunpack.c.l.b16 %v201
    %v274 = vunpack.c.l.b16 %v202
    %v275 = vunpack.c.l.b16 %v203
    %v276 = vunpack.c.l.b16 %v204
    %v277 = vunpack.c.l.b16 %v205
    %v278 = vunpack.c.l.b16 %v206
    %v279 = vunpack.c.l.b16 %v207
    %v280 = vunpack.c.l.b16 %v208
    %v281 = vunpack.c.l.b16 %v209
    %v282 = vunpack.c.l.b16 %v210
    %v283 = vunpack.c.l.b16 %v211
    %v284 = vunpack.c.l.b16 %v212
    %v285 = vunpack.c.l.b16 %v213
    %v286 = vunpack.c.l.b16 %v214
    %v287 = vunpack.c.l.b16 %v215
    %v288 = vunpack.c.l.b16 %v216
    %v289 = vpack.c.b16 %v258, %v257
    %v290 = vpack.c.b16 %v260, %v259
    %v291 = vpack.c.b16 %v262, %v261
    %v292 = vpack.c.b16 %v264, %v263
    %v293 = vpack.c.b16 %v266, %v265
    %v294 = vpack.c.b16 %v268, %v267
    %v295 = vpack.c.b16 %v270, %v269
    %v296 = vpack.c.b16 %v272, %v271
    %v297 = vpack.c.b16 %v274, %v273
    %v298 = vpack.c.b16 %v276, %v275
    %v299 = vpack.c.b16 %v278, %v277
    %v300 = vpack.c.b16 %v280, %v279
    %v301 = vpack.c.b16 %v282, %v281
    %v302 = vpack.c.b16 %v284, %v283
    %v303 = vpack.c.b16 %v286, %v285
    %v304 = vpack.c.b16 %v288, %v287
    %321 = vmatprep.subr.bf16.mxu0 0
    %322 = vmatpush1.bf16.msra.mxu0 %v289
    %323 = vmatprep.subr.bf16.mxu0 0
    %324 = vmatpush1.bf16.msra.mxu0 %v290
    %325 = vmatprep.subr.bf16.mxu0 0
    %326 = vmatpush1.bf16.msra.mxu0 %v291
    %327 = vmatprep.subr.bf16.mxu0 0
    %328 = vmatpush1.bf16.msra.mxu0 %v292
    %329 = vmatprep.subr.bf16.mxu0 0
    %330 = vmatpush1.bf16.msra.mxu0 %v293
    %331 = vmatprep.subr.bf16.mxu0 0
    %332 = vmatpush1.bf16.msra.mxu0 %v294
    %333 = vmatprep.subr.bf16.mxu0 0
    %334 = vmatpush1.bf16.msra.mxu0 %v295
    %335 = vmatprep.subr.bf16.mxu0 0
    %336 = vmatpush1.bf16.msra.mxu0 %v296
    %337 = vmatprep.subr.bf16.mxu0 0
    %338 = vmatpush1.bf16.msra.mxu0 %v297
    %339 = vmatprep.subr.bf16.mxu0 0
    %340 = vmatpush1.bf16.msra.mxu0 %v298
    %341 = vmatprep.subr.bf16.mxu0 0
    %342 = vmatpush1.bf16.msra.mxu0 %v299
    %343 = vmatprep.subr.bf16.mxu0 0
    %344 = vmatpush1.bf16.msra.mxu0 %v300
    %345 = vmatprep.subr.bf16.mxu0 0
    %346 = vmatpush1.bf16.msra.mxu0 %v301
    %347 = vmatprep.subr.bf16.mxu0 0
    %348 = vmatpush1.bf16.msra.mxu0 %v302
    %349 = vmatprep.subr.bf16.mxu0 0
    %350 = vmatpush1.bf16.msra.mxu0 %v303
    %351 = vmatprep.subr.bf16.mxu0 0
    %352 = vmatpush1.bf16.msra.mxu0 %v304
    %353 = vmatprep.mubr.bf16.mxu0 %v218
    %354 = vmatmul.mubr.bf16.gmra.mrb[0].mxu0 %v217
    %v355 = vpop.f32.mrb[0].mxu0
    %v356 = vadd.f32 %v223, %v355
    %v357 = vpop.f32.mrb[0].mxu0
    %v358 = vpop.f32.mrb[0].mxu0
    %v359 = vadd.f32 %v223, %v358
    %v360 = vpop.f32.mrb[0].mxu0
    %361 = vdwg.mxu0
    %v362 = vmax.f32 %v356, 0.0
    %v363 = vmax.f32 %v359, 0.0
    %v364 = vld [vmem:[%s5] sm:$0x1]
    %v365 = vld [vmem:[#allocation8] sm:$0xf]
    %v366 = vld [vmem:[#allocation8 + $0x4] sm:$0xf]
    %v367 = vld [vmem:[#allocation8 + $0x8] sm:$0xf]
    %v368 = vld [vmem:[#allocation8 + $0xc] sm:$0xf]
    %v369 = vld [vmem:[#allocation8 + $0x10] sm:$0xf]
    %v370 = vld [vmem:[#allocation8 + $0x14] sm:$0xf]
    %v371 = vld [vmem:[#allocation8 + $0x18] sm:$0xf]
    %v372 = vld [vmem:[#allocation8 + $0x1c] sm:$0xf]
    %v373 = vld [vmem:[#allocation8 + $0x20] sm:$0xf]
    %v374 = vld [vmem:[#allocation8 + $0x24] sm:$0xf]
    %v375 = vld [vmem:[#allocation8 + $0x28] sm:$0xf]
    %v376 = vld [vmem:[#allocation8 + $0x2c] sm:$0xf]
    %v377 = vld [vmem:[#allocation8 + $0x30] sm:$0xf]
    %v378 = vld [vmem:[#allocation8 + $0x34] sm:$0xf]
    %v379 = vld [vmem:[#allocation8 + $0x38] sm:$0xf]
    %v380 = vld [vmem:[#allocation8 + $0x3c] sm:$0xf]
    %v381 = vpack.c.bf16 %v363, %v362
    %v383 = vlaneseq
    %v384 = vshrl.u32 %v383, 7
    %v385 = vsub.s32 0, %v384
    %v386 = vrot.slane %v364, %v385
    %v404 = vunpack.c.l.b16 %v365
    %v405 = vunpack.c.l.b16 %v366
    %v406 = vunpack.c.l.b16 %v367
    %v407 = vunpack.c.l.b16 %v368
    %v408 = vunpack.c.l.b16 %v369
    %v409 = vunpack.c.l.b16 %v370
    %v410 = vunpack.c.l.b16 %v371
    %v411 = vunpack.c.l.b16 %v372
    %v412 = vunpack.c.l.b16 %v373
    %v413 = vunpack.c.l.b16 %v374
    %v414 = vunpack.c.l.b16 %v375
    %v415 = vunpack.c.l.b16 %v376
    %v416 = vunpack.c.l.b16 %v377
    %v417 = vunpack.c.l.b16 %v378
    %v418 = vunpack.c.l.b16 %v379
    %v419 = vunpack.c.l.b16 %v380
    %v420 = vpack.c.b16 %v405, %v404
    %v421 = vpack.c.b16 %v407, %v406
    %v422 = vpack.c.b16 %v409, %v408
    %v423 = vpack.c.b16 %v411, %v410
    %v424 = vpack.c.b16 %v413, %v412
    %v425 = vpack.c.b16 %v415, %v414
    %v426 = vpack.c.b16 %v417, %v416
    %v427 = vpack.c.b16 %v419, %v418
    %436 = vmatprep.subr.bf16.mxu0 0
    %437 = vmatpush1.bf16.msra.mxu0 %v420
    %438 = vmatprep.subr.bf16.mxu0 0
    %439 = vmatpush1.bf16.msra.mxu0 %v421
    %440 = vmatprep.subr.bf16.mxu0 0
    %441 = vmatpush1.bf16.msra.mxu0 %v422
    %442 = vmatprep.subr.bf16.mxu0 0
    %443 = vmatpush1.bf16.msra.mxu0 %v423
    %444 = vmatprep.subr.bf16.mxu0 0
    %445 = vmatpush1.bf16.msra.mxu0 %v424
    %446 = vmatprep.subr.bf16.mxu0 0
    %447 = vmatpush1.bf16.msra.mxu0 %v425
    %448 = vmatprep.subr.bf16.mxu0 0
    %449 = vmatpush1.bf16.msra.mxu0 %v426
    %450 = vmatprep.subr.bf16.mxu0 0
    %451 = vmatpush1.bf16.msra.mxu0 %v427
    %452 = vmatprep.subr.bf16.mxu0 0
    %453 = vmatpush1.bf16.msra.mxu0 0
    %454 = vmatprep.subr.bf16.mxu0 0
    %455 = vmatpush1.bf16.msra.mxu0 0
    %456 = vmatprep.subr.bf16.mxu0 0
    %457 = vmatpush1.bf16.msra.mxu0 0
    %458 = vmatprep.subr.bf16.mxu0 0
    %459 = vmatpush1.bf16.msra.mxu0 0
    %460 = vmatprep.subr.bf16.mxu0 0
    %461 = vmatpush1.bf16.msra.mxu0 0
    %462 = vmatprep.subr.bf16.mxu0 0
    %463 = vmatpush1.bf16.msra.mxu0 0
    %464 = vmatprep.subr.bf16.mxu0 0
    %465 = vmatpush1.bf16.msra.mxu0 0
    %466 = vmatprep.subr.bf16.mxu0 0
    %467 = vmatpush1.bf16.msra.mxu0 0
    %468 = vmatprep.mubr.bf16.mxu0 0
    %469 = vmatmul.mubr.bf16.gmra.mrb[0].mxu0 %v381
    %v470 = vpop.f32.mrb[0].mxu0
    %v471 = vadd.f32 %v386, %v470
    %v472 = vpop.f32.mrb[0].mxu0
    %v473 = vpop.f32.mrb[0].mxu0
    %v474 = vadd.f32 %v386, %v473
    %v475 = vpop.f32.mrb[0].mxu0
    %476 = vdwg.mxu0
    %v477 = vmax.f32 %v471, 0.0
    %v478 = vmax.f32 %v474, 0.0
    %v479 = vld [vmem:[%s7] sm:$0x1]
    %v480 = vld [vmem:[#allocation10] sm:$0xf]
    %v481 = vld [vmem:[#allocation10 + $0x4] sm:$0xf]
    %v482 = vld [vmem:[#allocation10 + $0x8] sm:$0xf]
    %v483 = vld [vmem:[#allocation10 + $0xc] sm:$0xf]
    %v484 = vld [vmem:[#allocation10 + $0x10] sm:$0xf]
    %v485 = vld [vmem:[#allocation10 + $0x14] sm:$0xf]
    %v486 = vld [vmem:[#allocation10 + $0x18] sm:$0xf]
    %v487 = vld [vmem:[#allocation10 + $0x1c] sm:$0xf]
    %v488 = vld [vmem:[#allocation10 + $0x20] sm:$0xf]
    %v489 = vld [vmem:[#allocation10 + $0x24] sm:$0xf]
    %v490 = vld [vmem:[#allocation10 + $0x28] sm:$0xf]
    %v491 = vld [vmem:[#allocation10 + $0x2c] sm:$0xf]
    %v492 = vld [vmem:[#allocation10 + $0x30] sm:$0xf]
    %v493 = vld [vmem:[#allocation10 + $0x34] sm:$0xf]
    %v494 = vld [vmem:[#allocation10 + $0x38] sm:$0xf]
    %v495 = vld [vmem:[#allocation10 + $0x3c] sm:$0xf]
    %v496 = vpack.c.bf16 %v478, %v477
    %v498 = vlaneseq
    %v499 = vshrl.u32 %v498, 7
    %v500 = vsub.s32 0, %v499
    %v501 = vrot.slane %v479, %v500
    %v519 = vunpack.c.l.b16 %v480
    %v520 = vunpack.c.l.b16 %v481
    %v521 = vunpack.c.l.b16 %v482
    %v522 = vunpack.c.l.b16 %v483
    %v523 = vunpack.c.l.b16 %v484
    %v524 = vunpack.c.l.b16 %v485
    %v525 = vunpack.c.l.b16 %v486
    %v526 = vunpack.c.l.b16 %v487
    %v527 = vunpack.c.l.b16 %v488
    %v528 = vunpack.c.l.b16 %v489
    %v529 = vunpack.c.l.b16 %v490
    %v530 = vunpack.c.l.b16 %v491
    %v531 = vunpack.c.l.b16 %v492
    %v532 = vunpack.c.l.b16 %v493
    %v533 = vunpack.c.l.b16 %v494
    %v534 = vunpack.c.l.b16 %v495
    %v535 = vpack.c.b16 %v520, %v519
    %v536 = vpack.c.b16 %v522, %v521
    %v537 = vpack.c.b16 %v524, %v523
    %v538 = vpack.c.b16 %v526, %v525
    %v539 = vpack.c.b16 %v528, %v527
    %v540 = vpack.c.b16 %v530, %v529
    %v541 = vpack.c.b16 %v532, %v531
    %v542 = vpack.c.b16 %v534, %v533
    %551 = vmatprep.subr.bf16.mxu0 0
    %552 = vmatpush1.bf16.msra.mxu0 %v535
    %553 = vmatprep.subr.bf16.mxu0 0
    %554 = vmatpush1.bf16.msra.mxu0 %v536
    %555 = vmatprep.subr.bf16.mxu0 0
    %556 = vmatpush1.bf16.msra.mxu0 %v537
    %557 = vmatprep.subr.bf16.mxu0 0
    %558 = vmatpush1.bf16.msra.mxu0 %v538
    %559 = vmatprep.subr.bf16.mxu0 0
    %560 = vmatpush1.bf16.msra.mxu0 %v539
    %561 = vmatprep.subr.bf16.mxu0 0
    %562 = vmatpush1.bf16.msra.mxu0 %v540
    %563 = vmatprep.subr.bf16.mxu0 0
    %564 = vmatpush1.bf16.msra.mxu0 %v541
    %565 = vmatprep.subr.bf16.mxu0 0
    %566 = vmatpush1.bf16.msra.mxu0 %v542
    %567 = vmatprep.subr.bf16.mxu0 0
    %568 = vmatpush1.bf16.msra.mxu0 0
    %569 = vmatprep.subr.bf16.mxu0 0
    %570 = vmatpush1.bf16.msra.mxu0 0
    %571 = vmatprep.subr.bf16.mxu0 0
    %572 = vmatpush1.bf16.msra.mxu0 0
    %573 = vmatprep.subr.bf16.mxu0 0
    %574 = vmatpush1.bf16.msra.mxu0 0
    %575 = vmatprep.subr.bf16.mxu0 0
    %576 = vmatpush1.bf16.msra.mxu0 0
    %577 = vmatprep.subr.bf16.mxu0 0
    %578 = vmatpush1.bf16.msra.mxu0 0
    %579 = vmatprep.subr.bf16.mxu0 0
    %580 = vmatpush1.bf16.msra.mxu0 0
    %581 = vmatprep.subr.bf16.mxu0 0
    %582 = vmatpush1.bf16.msra.mxu0 0
    %583 = vmatprep.mubr.bf16.mxu0 0
    %584 = vmatmul.mubr.bf16.gmra.mrb[0].mxu0 %v496
    %v585 = vpop.f32.mrb[0].mxu0
    %v586 = vadd.f32 %v501, %v585
    %v587 = vpop.f32.mrb[0].mxu0
    %v588 = vpop.f32.mrb[0].mxu0
    %v589 = vadd.f32 %v501, %v588
    %v590 = vpop.f32.mrb[0].mxu0
    %591 = vdwg.mxu0
    %v592 = vld [vmem:[#allocation11] sm:$0xff]
    %v593 = vld [vmem:[#allocation11 + $0x8] sm:$0xff]
    %v594 = vld [vmem:[#allocation11 + $0x10] sm:$0xff]
    %v595 = vld [vmem:[#allocation11 + $0x18] sm:$0xff]
    %v596 = vld [vmem:[#allocation11 + $0x20] sm:$0xff]
    %v597 = vld [vmem:[#allocation11 + $0x28] sm:$0xff]
    %v598 = vld [vmem:[#allocation11 + $0x30] sm:$0xff]
    %v599 = vld [vmem:[#allocation11 + $0x38] sm:$0xff]
    %v600 = vld [vmem:[#allocation11 + $0x40] sm:$0xff]
    %v601 = vld [vmem:[#allocation11 + $0x48] sm:$0xff]
    %v602 = vld [vmem:[#allocation11 + $0x50] sm:$0xff]
    %v603 = vld [vmem:[#allocation11 + $0x58] sm:$0xff]
    %v604 = vld [vmem:[#allocation11 + $0x60] sm:$0xff]
    %v605 = vld [vmem:[#allocation11 + $0x68] sm:$0xff]
    %v606 = vld [vmem:[#allocation11 + $0x70] sm:$0xff]
    %v607 = vld [vmem:[#allocation11 + $0x78] sm:$0xff]
    %v608 = vpack.c.bf16 %v589, %v586
    %v609 = vld [vmem:[%s9] sm:$0x3]
    %v611 = vlaneseq
    %v612 = vshrl.u32 %v611, 7
    %v613 = vsub.s32 0, %v612
    %v614 = vrot.slane %v609, %v613
    %v615 = vlaneseq
    %v616 = vshrl.u32 %v615, 7
    %v617 = vsub.s32 1, %v616
    %v618 = vrot.slane %v609, %v617
    %v637 = vunpack.c.l.b16 %v592
    %v638 = vunpack.c.h.b16 %v592
    %v639 = vunpack.c.l.b16 %v593
    %v640 = vunpack.c.h.b16 %v593
    %v641 = vunpack.c.l.b16 %v594
    %v642 = vunpack.c.h.b16 %v594
    %v643 = vunpack.c.l.b16 %v595
    %v644 = vunpack.c.h.b16 %v595
    %v645 = vunpack.c.l.b16 %v596
    %v646 = vunpack.c.h.b16 %v596
    %v647 = vunpack.c.l.b16 %v597
    %v648 = vunpack.c.h.b16 %v597
    %v649 = vunpack.c.l.b16 %v598
    %v650 = vunpack.c.h.b16 %v598
    %v651 = vunpack.c.l.b16 %v599
    %v652 = vunpack.c.h.b16 %v599
    %v653 = vunpack.c.l.b16 %v600
    %v654 = vunpack.c.h.b16 %v600
    %v655 = vunpack.c.l.b16 %v601
    %v656 = vunpack.c.h.b16 %v601
    %v657 = vunpack.c.l.b16 %v602
    %v658 = vunpack.c.h.b16 %v602
    %v659 = vunpack.c.l.b16 %v603
    %v660 = vunpack.c.h.b16 %v603
    %v661 = vunpack.c.l.b16 %v604
    %v662 = vunpack.c.h.b16 %v604
    %v663 = vunpack.c.l.b16 %v605
    %v664 = vunpack.c.h.b16 %v605
    %v665 = vunpack.c.l.b16 %v606
    %v666 = vunpack.c.h.b16 %v606
    %v667 = vunpack.c.l.b16 %v607
    %v668 = vunpack.c.h.b16 %v607
    %v669 = vpack.c.b16 %v639, %v637
    %v670 = vpack.c.b16 %v640, %v638
    %v671 = vpack.c.b16 %v643, %v641
    %v672 = vpack.c.b16 %v644, %v642
    %v673 = vpack.c.b16 %v647, %v645
    %v674 = vpack.c.b16 %v648, %v646
    %v675 = vpack.c.b16 %v651, %v649
    %v676 = vpack.c.b16 %v652, %v650
    %v677 = vpack.c.b16 %v655, %v653
    %v678 = vpack.c.b16 %v656, %v654
    %v679 = vpack.c.b16 %v659, %v657
    %v680 = vpack.c.b16 %v660, %v658
    %v681 = vpack.c.b16 %v663, %v661
    %v682 = vpack.c.b16 %v664, %v662
    %v683 = vpack.c.b16 %v667, %v665
    %v684 = vpack.c.b16 %v668, %v666
    %701 = vmatprep.subr.bf16.mxu0 %v670
    %702 = vmatpush1.bf16.msra.mxu0 %v669
    %703 = vmatprep.subr.bf16.mxu0 %v672
    %704 = vmatpush1.bf16.msra.mxu0 %v671
    %705 = vmatprep.subr.bf16.mxu0 %v674
    %706 = vmatpush1.bf16.msra.mxu0 %v673
    %707 = vmatprep.subr.bf16.mxu0 %v676
    %708 = vmatpush1.bf16.msra.mxu0 %v675
    %709 = vmatprep.subr.bf16.mxu0 %v678
    %710 = vmatpush1.bf16.msra.mxu0 %v677
    %711 = vmatprep.subr.bf16.mxu0 %v680
    %712 = vmatpush1.bf16.msra.mxu0 %v679
    %713 = vmatprep.subr.bf16.mxu0 %v682
    %714 = vmatpush1.bf16.msra.mxu0 %v681
    %715 = vmatprep.subr.bf16.mxu0 %v684
    %716 = vmatpush1.bf16.msra.mxu0 %v683
    %717 = vmatprep.subr.bf16.mxu0 0
    %718 = vmatpush1.bf16.msra.mxu0 0
    %719 = vmatprep.subr.bf16.mxu0 0
    %720 = vmatpush1.bf16.msra.mxu0 0
    %721 = vmatprep.subr.bf16.mxu0 0
    %722 = vmatpush1.bf16.msra.mxu0 0
    %723 = vmatprep.subr.bf16.mxu0 0
    %724 = vmatpush1.bf16.msra.mxu0 0
    %725 = vmatprep.subr.bf16.mxu0 0
    %726 = vmatpush1.bf16.msra.mxu0 0
    %727 = vmatprep.subr.bf16.mxu0 0
    %728 = vmatpush1.bf16.msra.mxu0 0
    %729 = vmatprep.subr.bf16.mxu0 0
    %730 = vmatpush1.bf16.msra.mxu0 0
    %731 = vmatprep.subr.bf16.mxu0 0
    %732 = vmatpush1.bf16.msra.mxu0 0
    %733 = vmatprep.mubr.bf16.mxu0 0
    %734 = vmatmul.mubr.bf16.gmra.mrb[0].mxu0 %v608
    %v735 = vpop.f32.mrb[0].mxu0
    %v736 = vadd.f32 %v614, %v735
    %v737 = vpop.f32.mrb[0].mxu0
    %v738 = vadd.f32 %v618, %v737
    %v739 = vpop.f32.mrb[0].mxu0
    %v740 = vadd.f32 %v614, %v739
    %v741 = vpop.f32.mrb[0].mxu0
    %v742 = vadd.f32 %v618, %v741
    %743 = vdwg.mxu0
    %v744 = vmul.f32 %v738, 1.442695
    %v745 = vpow.pop %v744
    %v746 = vmul.f32 %v742, 1.442695
    %v747 = vpow.pop %v746
    %v748 = vld [vmem:[#allocation5] sm:$0xff]
    %v749 = vld [vmem:[#allocation5 + $0x8] sm:$0xff]
    %v750 = vmul.f32 %v745, %v748
    %v751 = vmul.f32 %v747, %v749
    %v752 = vadd.f32 %v736, %v750
    %v753 = vadd.f32 %v740, %v751
    %754 = vst [vmem:[#allocation18] sm:$0xff] %v752
    %755 = vst [vmem:[#allocation18 + $0x8] sm:$0xff] %v753
    %v756 = vld [vmem:[%s11] sm:$0x1]
    %v757 = vld [vmem:[#allocation13] sm:$0xf]
    %v758 = vld [vmem:[#allocation13 + $0x4] sm:$0xf]
    %v759 = vld [vmem:[#allocation13 + $0x8] sm:$0xf]
    %v760 = vld [vmem:[#allocation13 + $0xc] sm:$0xf]
    %v761 = vld [vmem:[#allocation13 + $0x10] sm:$0xf]
    %v762 = vld [vmem:[#allocation13 + $0x14] sm:$0xf]
    %v763 = vld [vmem:[#allocation13 + $0x18] sm:$0xf]
    %v764 = vld [vmem:[#allocation13 + $0x1c] sm:$0xf]
    %v765 = vld [vmem:[#allocation13 + $0x20] sm:$0xf]
    %v766 = vld [vmem:[#allocation13 + $0x24] sm:$0xf]
    %v767 = vld [vmem:[#allocation13 + $0x28] sm:$0xf]
    %v768 = vld [vmem:[#allocation13 + $0x2c] sm:$0xf]
    %v769 = vld [vmem:[#allocation13 + $0x30] sm:$0xf]
    %v770 = vld [vmem:[#allocation13 + $0x34] sm:$0xf]
    %v771 = vld [vmem:[#allocation13 + $0x38] sm:$0xf]
    %v772 = vld [vmem:[#allocation13 + $0x3c] sm:$0xf]
    %v773 = vpack.c.bf16 %v753, %v752
    %v775 = vlaneseq
    %v776 = vshrl.u32 %v775, 7
    %v777 = vsub.s32 0, %v776
    %v778 = vrot.slane %v756, %v777
    %v796 = vunpack.c.l.b16 %v757
    %v797 = vunpack.c.l.b16 %v758
    %v798 = vunpack.c.l.b16 %v759
    %v799 = vunpack.c.l.b16 %v760
    %v800 = vunpack.c.l.b16 %v761
    %v801 = vunpack.c.l.b16 %v762
    %v802 = vunpack.c.l.b16 %v763
    %v803 = vunpack.c.l.b16 %v764
    %v804 = vunpack.c.l.b16 %v765
    %v805 = vunpack.c.l.b16 %v766
    %v806 = vunpack.c.l.b16 %v767
    %v807 = vunpack.c.l.b16 %v768
    %v808 = vunpack.c.l.b16 %v769
    %v809 = vunpack.c.l.b16 %v770
    %v810 = vunpack.c.l.b16 %v771
    %v811 = vunpack.c.l.b16 %v772
    %v812 = vpack.c.b16 %v797, %v796
    %v813 = vpack.c.b16 %v799, %v798
    %v814 = vpack.c.b16 %v801, %v800
    %v815 = vpack.c.b16 %v803, %v802
    %v816 = vpack.c.b16 %v805, %v804
    %v817 = vpack.c.b16 %v807, %v806
    %v818 = vpack.c.b16 %v809, %v808
    %v819 = vpack.c.b16 %v811, %v810
    %828 = vmatprep.subr.bf16.mxu0 0
    %829 = vmatpush1.bf16.msra.mxu0 %v812
    %830 = vmatprep.subr.bf16.mxu0 0
    %831 = vmatpush1.bf16.msra.mxu0 %v813
    %832 = vmatprep.subr.bf16.mxu0 0
    %833 = vmatpush1.bf16.msra.mxu0 %v814
    %834 = vmatprep.subr.bf16.mxu0 0
    %835 = vmatpush1.bf16.msra.mxu0 %v815
    %836 = vmatprep.subr.bf16.mxu0 0
    %837 = vmatpush1.bf16.msra.mxu0 %v816
    %838 = vmatprep.subr.bf16.mxu0 0
    %839 = vmatpush1.bf16.msra.mxu0 %v817
    %840 = vmatprep.subr.bf16.mxu0 0
    %841 = vmatpush1.bf16.msra.mxu0 %v818
    %842 = vmatprep.subr.bf16.mxu0 0
    %843 = vmatpush1.bf16.msra.mxu0 %v819
    %844 = vmatprep.subr.bf16.mxu0 0
    %845 = vmatpush1.bf16.msra.mxu0 0
    %846 = vmatprep.subr.bf16.mxu0 0
    %847 = vmatpush1.bf16.msra.mxu0 0
    %848 = vmatprep.subr.bf16.mxu0 0
    %849 = vmatpush1.bf16.msra.mxu0 0
    %850 = vmatprep.subr.bf16.mxu0 0
    %851 = vmatpush1.bf16.msra.mxu0 0
    %852 = vmatprep.subr.bf16.mxu0 0
    %853 = vmatpush1.bf16.msra.mxu0 0
    %854 = vmatprep.subr.bf16.mxu0 0
    %855 = vmatpush1.bf16.msra.mxu0 0
    %856 = vmatprep.subr.bf16.mxu0 0
    %857 = vmatpush1.bf16.msra.mxu0 0
    %858 = vmatprep.subr.bf16.mxu0 0
    %859 = vmatpush1.bf16.msra.mxu0 0
    %860 = vmatprep.mubr.bf16.mxu0 0
    %861 = vmatmul.mubr.bf16.gmra.mrb[0].mxu0 %v773
    %v862 = vpop.f32.mrb[0].mxu0
    %v863 = vadd.f32 %v778, %v862
    %v864 = vpop.f32.mrb[0].mxu0
    %v865 = vpop.f32.mrb[0].mxu0
    %v866 = vadd.f32 %v778, %v865
    %v867 = vpop.f32.mrb[0].mxu0
    %868 = vdwg.mxu0
    %v869 = vmax.f32 %v863, 0.0
    %v870 = vmax.f32 %v866, 0.0
    %v871 = vld [vmem:[%s13] sm:$0x1]
    %v872 = vld [vmem:[#allocation14] sm:$0xf]
    %v873 = vld [vmem:[#allocation14 + $0x4] sm:$0xf]
    %v874 = vld [vmem:[#allocation14 + $0x8] sm:$0xf]
    %v875 = vld [vmem:[#allocation14 + $0xc] sm:$0xf]
    %v876 = vld [vmem:[#allocation14 + $0x10] sm:$0xf]
    %v877 = vld [vmem:[#allocation14 + $0x14] sm:$0xf]
    %v878 = vld [vmem:[#allocation14 + $0x18] sm:$0xf]
    %v879 = vld [vmem:[#allocation14 + $0x1c] sm:$0xf]
    %v880 = vld [vmem:[#allocation14 + $0x20] sm:$0xf]
    %v881 = vld [vmem:[#allocation14 + $0x24] sm:$0xf]
    %v882 = vld [vmem:[#allocation14 + $0x28] sm:$0xf]
    %v883 = vld [vmem:[#allocation14 + $0x2c] sm:$0xf]
    %v884 = vld [vmem:[#allocation14 + $0x30] sm:$0xf]
    %v885 = vld [vmem:[#allocation14 + $0x34] sm:$0xf]
    %v886 = vld [vmem:[#allocation14 + $0x38] sm:$0xf]
    %v887 = vld [vmem:[#allocation14 + $0x3c] sm:$0xf]
    %v888 = vpack.c.bf16 %v870, %v869
    %v890 = vlaneseq
    %v891 = vshrl.u32 %v890, 7
    %v892 = vsub.s32 0, %v891
    %v893 = vrot.slane %v871, %v892
    %v911 = vunpack.c.l.b16 %v872
    %v912 = vunpack.c.l.b16 %v873
    %v913 = vunpack.c.l.b16 %v874
    %v914 = vunpack.c.l.b16 %v875
    %v915 = vunpack.c.l.b16 %v876
    %v916 = vunpack.c.l.b16 %v877
    %v917 = vunpack.c.l.b16 %v878
    %v918 = vunpack.c.l.b16 %v879
    %v919 = vunpack.c.l.b16 %v880
    %v920 = vunpack.c.l.b16 %v881
    %v921 = vunpack.c.l.b16 %v882
    %v922 = vunpack.c.l.b16 %v883
    %v923 = vunpack.c.l.b16 %v884
    %v924 = vunpack.c.l.b16 %v885
    %v925 = vunpack.c.l.b16 %v886
    %v926 = vunpack.c.l.b16 %v887
    %v927 = vpack.c.b16 %v912, %v911
    %v928 = vpack.c.b16 %v914, %v913
    %v929 = vpack.c.b16 %v916, %v915
    %v930 = vpack.c.b16 %v918, %v917
    %v931 = vpack.c.b16 %v920, %v919
    %v932 = vpack.c.b16 %v922, %v921
    %v933 = vpack.c.b16 %v924, %v923
    %v934 = vpack.c.b16 %v926, %v925
    %943 = vmatprep.subr.bf16.mxu0 0
    %944 = vmatpush1.bf16.msra.mxu0 %v927
    %945 = vmatprep.subr.bf16.mxu0 0
    %946 = vmatpush1.bf16.msra.mxu0 %v928
    %947 = vmatprep.subr.bf16.mxu0 0
    %948 = vmatpush1.bf16.msra.mxu0 %v929
    %949 = vmatprep.subr.bf16.mxu0 0
    %950 = vmatpush1.bf16.msra.mxu0 %v930
    %951 = vmatprep.subr.bf16.mxu0 0
    %952 = vmatpush1.bf16.msra.mxu0 %v931
    %953 = vmatprep.subr.bf16.mxu0 0
    %954 = vmatpush1.bf16.msra.mxu0 %v932
    %955 = vmatprep.subr.bf16.mxu0 0
    %956 = vmatpush1.bf16.msra.mxu0 %v933
    %957 = vmatprep.subr.bf16.mxu0 0
    %958 = vmatpush1.bf16.msra.mxu0 %v934
    %959 = vmatprep.subr.bf16.mxu0 0
    %960 = vmatpush1.bf16.msra.mxu0 0
    %961 = vmatprep.subr.bf16.mxu0 0
    %962 = vmatpush1.bf16.msra.mxu0 0
    %963 = vmatprep.subr.bf16.mxu0 0
    %964 = vmatpush1.bf16.msra.mxu0 0
    %965 = vmatprep.subr.bf16.mxu0 0
    %966 = vmatpush1.bf16.msra.mxu0 0
    %967 = vmatprep.subr.bf16.mxu0 0
    %968 = vmatpush1.bf16.msra.mxu0 0
    %969 = vmatprep.subr.bf16.mxu0 0
    %970 = vmatpush1.bf16.msra.mxu0 0
    %971 = vmatprep.subr.bf16.mxu0 0
    %972 = vmatpush1.bf16.msra.mxu0 0
    %973 = vmatprep.subr.bf16.mxu0 0
    %974 = vmatpush1.bf16.msra.mxu0 0
    %975 = vmatprep.mubr.bf16.mxu0 0
    %976 = vmatmul.mubr.bf16.gmra.mrb[0].mxu0 %v888
    %v977 = vpop.f32.mrb[0].mxu0
    %v978 = vadd.f32 %v893, %v977
    %v979 = vpop.f32.mrb[0].mxu0
    %v980 = vpop.f32.mrb[0].mxu0
    %v981 = vadd.f32 %v893, %v980
    %v982 = vpop.f32.mrb[0].mxu0
    %983 = vdwg.mxu0
    %v984 = vmax.f32 %v978, 0.0
    %v985 = vmax.f32 %v981, 0.0
    %v986 = vld [vmem:[#allocation16] sm:$0xff]
    %v987 = vld [vmem:[#allocation16 + $0x8] sm:$0xff]
    %v988 = vld [vmem:[#allocation16 + $0x10] sm:$0xff]
    %v989 = vld [vmem:[#allocation16 + $0x18] sm:$0xff]
    %v990 = vld [vmem:[#allocation16 + $0x20] sm:$0xff]
    %v991 = vld [vmem:[#allocation16 + $0x28] sm:$0xff]
    %v992 = vld [vmem:[#allocation16 + $0x30] sm:$0xff]
    %v993 = vld [vmem:[#allocation16 + $0x38] sm:$0xff]
    %v994 = vld [vmem:[#allocation16 + $0x40] sm:$0xff]
    %v995 = vld [vmem:[#allocation16 + $0x48] sm:$0xff]
    %v996 = vld [vmem:[#allocation16 + $0x50] sm:$0xff]
    %v997 = vld [vmem:[#allocation16 + $0x58] sm:$0xff]
    %v998 = vld [vmem:[#allocation16 + $0x60] sm:$0xff]
    %v999 = vld [vmem:[#allocation16 + $0x68] sm:$0xff]
    %v1000 = vld [vmem:[#allocation16 + $0x70] sm:$0xff]
    %v1001 = vld [vmem:[#allocation16 + $0x78] sm:$0xff]
    %v1002 = vpack.c.bf16 %v985, %v984
    %v1003 = vld [vmem:[%s15] sm:$0x3]
    %v1005 = vlaneseq
    %v1006 = vshrl.u32 %v1005, 7
    %v1007 = vsub.s32 0, %v1006
    %v1008 = vrot.slane %v1003, %v1007
    %v1009 = vlaneseq
    %v1010 = vshrl.u32 %v1009, 7
    %v1011 = vsub.s32 1, %v1010
    %v1012 = vrot.slane %v1003, %v1011
    %v1031 = vunpack.c.l.b16 %v986
    %v1032 = vunpack.c.h.b16 %v986
    %v1033 = vunpack.c.l.b16 %v987
    %v1034 = vunpack.c.h.b16 %v987
    %v1035 = vunpack.c.l.b16 %v988
    %v1036 = vunpack.c.h.b16 %v988
    %v1037 = vunpack.c.l.b16 %v989
    %v1038 = vunpack.c.h.b16 %v989
    %v1039 = vunpack.c.l.b16 %v990
    %v1040 = vunpack.c.h.b16 %v990
    %v1041 = vunpack.c.l.b16 %v991
    %v1042 = vunpack.c.h.b16 %v991
    %v1043 = vunpack.c.l.b16 %v992
    %v1044 = vunpack.c.h.b16 %v992
    %v1045 = vunpack.c.l.b16 %v993
    %v1046 = vunpack.c.h.b16 %v993
    %v1047 = vunpack.c.l.b16 %v994
    %v1048 = vunpack.c.h.b16 %v994
    %v1049 = vunpack.c.l.b16 %v995
    %v1050 = vunpack.c.h.b16 %v995
    %v1051 = vunpack.c.l.b16 %v996
    %v1052 = vunpack.c.h.b16 %v996
    %v1053 = vunpack.c.l.b16 %v997
    %v1054 = vunpack.c.h.b16 %v997
    %v1055 = vunpack.c.l.b16 %v998
    %v1056 = vunpack.c.h.b16 %v998
    %v1057 = vunpack.c.l.b16 %v999
    %v1058 = vunpack.c.h.b16 %v999
    %v1059 = vunpack.c.l.b16 %v1000
    %v1060 = vunpack.c.h.b16 %v1000
    %v1061 = vunpack.c.l.b16 %v1001
    %v1062 = vunpack.c.h.b16 %v1001
    %v1063 = vpack.c.b16 %v1033, %v1031
    %v1064 = vpack.c.b16 %v1034, %v1032
    %v1065 = vpack.c.b16 %v1037, %v1035
    %v1066 = vpack.c.b16 %v1038, %v1036
    %v1067 = vpack.c.b16 %v1041, %v1039
    %v1068 = vpack.c.b16 %v1042, %v1040
    %v1069 = vpack.c.b16 %v1045, %v1043
    %v1070 = vpack.c.b16 %v1046, %v1044
    %v1071 = vpack.c.b16 %v1049, %v1047
    %v1072 = vpack.c.b16 %v1050, %v1048
    %v1073 = vpack.c.b16 %v1053, %v1051
    %v1074 = vpack.c.b16 %v1054, %v1052
    %v1075 = vpack.c.b16 %v1057, %v1055
    %v1076 = vpack.c.b16 %v1058, %v1056
    %v1077 = vpack.c.b16 %v1061, %v1059
    %v1078 = vpack.c.b16 %v1062, %v1060
    %1095 = vmatprep.subr.bf16.mxu0 %v1064
    %1096 = vmatpush1.bf16.msra.mxu0 %v1063
    %1097 = vmatprep.subr.bf16.mxu0 %v1066
    %1098 = vmatpush1.bf16.msra.mxu0 %v1065
    %1099 = vmatprep.subr.bf16.mxu0 %v1068
    %1100 = vmatpush1.bf16.msra.mxu0 %v1067
    %1101 = vmatprep.subr.bf16.mxu0 %v1070
    %1102 = vmatpush1.bf16.msra.mxu0 %v1069
    %1103 = vmatprep.subr.bf16.mxu0 %v1072
    %1104 = vmatpush1.bf16.msra.mxu0 %v1071
    %1105 = vmatprep.subr.bf16.mxu0 %v1074
    %1106 = vmatpush1.bf16.msra.mxu0 %v1073
    %1107 = vmatprep.subr.bf16.mxu0 %v1076
    %1108 = vmatpush1.bf16.msra.mxu0 %v1075
    %1109 = vmatprep.subr.bf16.mxu0 %v1078
    %1110 = vmatpush1.bf16.msra.mxu0 %v1077
    %1111 = vmatprep.subr.bf16.mxu0 0
    %1112 = vmatpush1.bf16.msra.mxu0 0
    %1113 = vmatprep.subr.bf16.mxu0 0
    %1114 = vmatpush1.bf16.msra.mxu0 0
    %1115 = vmatprep.subr.bf16.mxu0 0
    %1116 = vmatpush1.bf16.msra.mxu0 0
    %1117 = vmatprep.subr.bf16.mxu0 0
    %1118 = vmatpush1.bf16.msra.mxu0 0
    %1119 = vmatprep.subr.bf16.mxu0 0
    %1120 = vmatpush1.bf16.msra.mxu0 0
    %1121 = vmatprep.subr.bf16.mxu0 0
    %1122 = vmatpush1.bf16.msra.mxu0 0
    %1123 = vmatprep.subr.bf16.mxu0 0
    %1124 = vmatpush1.bf16.msra.mxu0 0
    %1125 = vmatprep.subr.bf16.mxu0 0
    %1126 = vmatpush1.bf16.msra.mxu0 0
    %1127 = vmatprep.mubr.bf16.mxu0 0
    %1128 = vmatmul.mubr.bf16.gmra.mrb[0].mxu0 %v1002
    %v1129 = vpop.f32.mrb[0].mxu0
    %v1130 = vadd.f32 %v1008, %v1129
    %v1131 = vpop.f32.mrb[0].mxu0
    %v1132 = vadd.f32 %v1012, %v1131
    %v1133 = vpop.f32.mrb[0].mxu0
    %v1134 = vadd.f32 %v1008, %v1133
    %v1135 = vpop.f32.mrb[0].mxu0
    %v1136 = vadd.f32 %v1012, %v1135
    %1137 = vdwg.mxu0
    %v1138 = vxor.u32 %v1130, 2147483648
    %v1139 = vxor.u32 %v1132, 2147483648
    %v1140 = vxor.u32 %v1134, 2147483648
    %v1141 = vxor.u32 %v1136, 2147483648
    %v1142 = vmul.f32 %v1138, 1.442695
    %v1143 = vpow.pop %v1142
    %v1144 = vmul.f32 %v1139, 1.442695
    %v1145 = vpow.pop %v1144
    %v1146 = vmul.f32 %v1140, 1.442695
    %v1147 = vpow.pop %v1146
    %v1148 = vmul.f32 %v1141, 1.442695
    %v1149 = vpow.pop %v1148
    %v1150 = vadd.f32 %v1143, 1.0
    %v1151 = vadd.f32 %v1145, 1.0
    %v1152 = vadd.f32 %v1147, 1.0
    %v1153 = vadd.f32 %v1149, 1.0
    %v1154 = vrcp.pop %v1150
    %v1155 = vmul.f32 1.0, %v1154
    %v1156 = vrcp.pop %v1151
    %v1157 = vmul.f32 1.0, %v1156
    %v1158 = vrcp.pop %v1152
    %v1159 = vmul.f32 1.0, %v1158
    %v1160 = vrcp.pop %v1153
    %v1161 = vmul.f32 1.0, %v1160
    %1162 = vst [vmem:[#allocation17] sm:$0xff] %v1155
    %1163 = vst [vmem:[#allocation17 + $0x8] sm:$0xff] %v1157
    %1164 = vst [vmem:[#allocation17 + $0x10] sm:$0xff] %v1159
    %1165 = vst [vmem:[#allocation17 + $0x18] sm:$0xff] %v1161
    // Predicated region
    $region102: #{tpu_custom_call.1} parent=1 // pred_check
      _
    $region103: #{tpu_custom_call.1} parent=1 // pred_check_branch
      %1167 = sbr.rel (0) target = $region105
    $region104: #{tpu_custom_call.1} parent=1 // pred_region
      %s1169 = ssub.s32 512, 512
      %1170 = vsyncadd [#allocation4], %s1169
      %s1171 = sshll.u32 [#allocation17], 4
      %s1172 = int_to_ptr.vmem [resolvable:$true] %s1171
      %1177 = dma.vmem_to_hbm [thread:$0]  %s1172, 512, %s16, [#allocation4], 256, 256, 16
    $region105: #{tpu_custom_call.1} parent=1 // pred_fallthru
      _
    // Predicated region
    $region106: #{tpu_custom_call.1} parent=1 // pred_check
      _
    $region107: #{tpu_custom_call.1} parent=1 // pred_check_branch
      %1179 = sbr.rel (0) target = $region109
    $region108: #{tpu_custom_call.1} parent=1 // pred_region
      %s1181 = ssub.s32 256, 256
      %1182 = vsyncadd [#allocation19], %s1181
      %s1183 = sshll.u32 [#allocation18], 4
      %s1184 = int_to_ptr.vmem [resolvable:$true] %s1183
      %1189 = dma.vmem_to_hbm [thread:$0]  %s1184, 256, %s17, [#allocation19], 128, 128, 8
    $region109: #{tpu_custom_call.1} parent=1 // pred_fallthru
      _
    // Predicated region
    $region110: #{tpu_custom_call.1} parent=1 // pred_check
      _
    $region111: #{tpu_custom_call.1} parent=1 // pred_check_branch
      %1191 = sbr.rel (0) target = $region113
    $region112: #{tpu_custom_call.1} parent=1 // pred_region
      %1192 = dma.done [#allocation4], 512
    $region113: #{tpu_custom_call.1} parent=1 // pred_fallthru
      _
    // Predicated region
    $region114: #{tpu_custom_call.1} parent=1 // pred_check
      _
    $region115: #{tpu_custom_call.1} parent=1 // pred_check_branch
      %1194 = sbr.rel (0) target = $region117
    $region116: #{tpu_custom_call.1} parent=1 // pred_region
      %1195 = dma.done [#allocation19], 256
    $region117: #{tpu_custom_call.1} parent=1 // pred_fallthru
      _
    %1196 = vsyncpa [#allocation3], 1
    %1197 = vsyncpa [#allocation6], 1
    %1198 = vsyncpa [#allocation9], 1
    %1199 = vsyncpa [#allocation12], 1
    %1200 = vsyncpa [#allocation15], 1
    %1201 = vsyncpa [#allocation4], 1
    %1202 = vsyncpa [#allocation19], 1

</llo_original>
